<compile_context>
chip_gen: v7x
topology: tpu7x:2x2x1
jax: 0.10.0
libtpu: 0.0.40
codegen_flags: <defaults>
</compile_context>

<pallas_src>
import functools

import jax
import jax.numpy as jnp
from jax.experimental import pallas as pl
from jax.experimental.pallas import tpu as pltpu

BN_EPS = 1e-5


def _round_up(x, m):
    return ((x + m - 1) // m) * m


# ---------------------------------------------------------------------------
# Pass-1 kernels.
# ---------------------------------------------------------------------------
def _stats_recompute_kernel(patches_ref, w_ref, sum_ref, sumsq_ref):
    """Conv tile (MXU, bf16 -> f32 acc); emit per-channel partial sum / sumsq only."""
    y = jnp.dot(patches_ref[...], w_ref[...], preferred_element_type=jnp.float32)
    sum_ref[0] = jnp.sum(y, axis=0, keepdims=True)          # (1, TILE_N)
    sumsq_ref[0] = jnp.sum(y * y, axis=0, keepdims=True)     # (1, TILE_N)


def _stats_store_kernel(patches_ref, w_ref, act_ref, sum_ref, sumsq_ref):
    """Conv tile; store bf16 activation and stats computed from that same bf16 activation."""
    y = jnp.dot(patches_ref[...], w_ref[...], preferred_element_type=jnp.float32)
    yb = y.astype(jnp.bfloat16)
    act_ref[...] = yb
    yf = yb.astype(jnp.float32)   # stats from the STORED activation -> consistent with pass 2
    sum_ref[0] = jnp.sum(yf, axis=0, keepdims=True)
    sumsq_ref[0] = jnp.sum(yf * yf, axis=0, keepdims=True)


# ---------------------------------------------------------------------------
# Pass-2 kernels.
# ---------------------------------------------------------------------------
def _make_apply_recompute_kernel(residual: bool):
    """Recompute the conv tile, apply folded BN affine (+ residual) + ReLU, store bf16."""
    if residual:
        def kernel(patches_ref, w_ref, scale_ref, shift_ref, res_ref, out_ref):
            y = jnp.dot(patches_ref[...], w_ref[...], preferred_element_type=jnp.float32)
            y = y * scale_ref[...] + shift_ref[...]
            y = y + res_ref[...].astype(jnp.float32)
            out_ref[...] = jnp.maximum(y, 0.0).astype(out_ref.dtype)
    else:
        def kernel(patches_ref, w_ref, scale_ref, shift_ref, out_ref):
            y = jnp.dot(patches_ref[...], w_ref[...], preferred_element_type=jnp.float32)
            y = y * scale_ref[...] + shift_ref[...]
            out_ref[...] = jnp.maximum(y, 0.0).astype(out_ref.dtype)
    return kernel


def _make_apply_elementwise_kernel(residual: bool):
    """Pure elementwise BN affine (+ residual) + ReLU over the stored bf16 activation."""
    if residual:
        def kernel(act_ref, scale_ref, shift_ref, res_ref, out_ref):
            y = act_ref[...].astype(jnp.float32) * scale_ref[...] + shift_ref[...]
            y = y + res_ref[...].astype(jnp.float32)
            out_ref[...] = jnp.maximum(y, 0.0).astype(out_ref.dtype)
    else:
        def kernel(act_ref, scale_ref, shift_ref, out_ref):
            y = act_ref[...].astype(jnp.float32) * scale_ref[...] + shift_ref[...]
            out_ref[...] = jnp.maximum(y, 0.0).astype(out_ref.dtype)
    return kernel


# ---------------------------------------------------------------------------
# Plain-JAX glue.
# ---------------------------------------------------------------------------
def _im2col_nhwc(x_nhwc, K, stride, padding):
    """Extract conv patches (already bf16). Feature order is (kh, kw, cin)."""
    N, H, W, C = x_nhwc.shape
    xp = jnp.pad(x_nhwc, ((0, 0), (padding, padding), (padding, padding), (0, 0)))
    Ho = (H + 2 * padding - K) // stride + 1
    Wo = (W + 2 * padding - K) // stride + 1
    cols = []
    for kh in range(K):
        for kw in range(K):
            patch = xp[:, kh:kh + (Ho - 1) * stride + 1:stride,
                          kw:kw + (Wo - 1) * stride + 1:stride, :]
            cols.append(patch)
    patches = jnp.concatenate(cols, axis=-1)            # (N, Ho, Wo, K*K*C), bf16
    return patches.reshape(N * Ho * Wo, K * K * C), Ho, Wo


def _vmem_budget_bytes():
    """Per-generation VMEM budget (v5e/v6e: 128 MiB, v7x: 64 MiB per TC) with headroom."""
    try:
        cap = pltpu.get_tpu_info().vmem_capacity_bytes
    except Exception:
        cap = 128 << 20
    return min(cap // 2, 64 << 20)


def _choose_tile_m(M, Kd, tile_n, residual, budget):
    """Largest TILE_M whose double-buffered working set (incl. double-buffered weights and
    the f32 temporaries) fits the per-generation VMEM budget."""
    def working_set(t):
        streamed = t * Kd * 2 + 2 * t * tile_n * 2        # patches/act in (bf16) + bf16 out
        if residual:
            streamed += t * tile_n * 2                    # bf16 residual tile
        temps = 2 * t * tile_n * 4                        # f32 y / scaled temporaries
        resident = 2 * (Kd * tile_n * 2) + 4 * tile_n * 4  # double-buffered weights + scale/shift
        return 2 * streamed + temps + resident
    tile = 2048 if budget >= (64 << 20) else 1024         # 2048 on v5e/v6e, 1024 cap on v7x
    while tile > 8 and working_set(tile) > budget:
        tile //= 2
    return max(8, min(tile, _round_up(M, 8)))


@functools.partial(jax.jit, static_argnames=("kernel_size", "stride", "padding", "residual"))
def conv2d_block(x_nchw, weight, bias, gamma, beta, *,
                 kernel_size, stride, padding, residual=False):
    """Forward of the PyTorch Conv2d module (Conv + BN(train-mode) + optional residual + ReLU)."""
    del bias  # conv bias is exactly cancelled by train-mode BatchNorm mean subtraction
    N, Cin, H, W = x_nchw.shape
    Cout = weight.shape[0]
    K = kernel_size

    # bf16 on every HBM-facing surface: im2col built directly in bf16.
    x_nhwc = jnp.transpose(x_nchw, (0, 2, 3, 1)).astype(jnp.bfloat16)
    patches, Ho, Wo = _im2col_nhwc(x_nhwc, K, stride, padding)          # (M, Kd) bf16
    M, Kd = patches.shape
    Cpad = _round_up(Cout, 128)             # lane-dense (unmasked-store) output channels

    # Optional channel tiling keeps the resident weight block small for large Cout.
    if Cpad <= 512:
        TILE_N = Cpad
    else:
        TILE_N = max(t for t in (512, 256, 128) if Cpad % t == 0)
    num_tiles_n = Cpad // TILE_N

    # Shape-dependent structure: store the bf16 activation (single matmul) when the patch
    # matrix is wide (Kd >= 2*Cpad), otherwise recompute the matmul in pass 2.
    store_act = Kd >= 2 * Cpad

    budget = _vmem_budget_bytes()
    TILE_M = _choose_tile_m(M, Kd, TILE_N, residual, budget)
    M_pad = _round_up(M, TILE_M)
    num_tiles_m = M_pad // TILE_M

    # Zero-padded rows contribute exactly zero to the BN sums; dividing by the true M keeps
    # the batch statistics exact.
    patches = jnp.pad(patches, ((0, M_pad - M), (0, 0)))

    # PyTorch weight (Cout, Cin, kh, kw) -> (kh, kw, Cin, Cout) -> (Kd, Cout) -> pad to Cpad.
    w_mat = jnp.transpose(weight, (2, 3, 1, 0)).reshape(Kd, Cout).astype(jnp.float32)
    w_mat = jnp.pad(w_mat, ((0, 0), (0, Cpad - Cout))).astype(jnp.bfloat16)

    gamma_p = jnp.pad(gamma.astype(jnp.float32), (0, Cpad - Cout))
    beta_p = jnp.pad(beta.astype(jnp.float32), (0, Cpad - Cout))

    compiler_params = pltpu.CompilerParams(
        dimension_semantics=("parallel", "parallel"),   # megacore shards both axes on v7x
        vmem_limit_bytes=budget,
    )
    matmul_flops = 2 * M_pad * Kd * Cpad

    patches_spec = pl.BlockSpec((TILE_M, Kd), lambda i, j: (i, 0))
    w_spec = pl.BlockSpec((Kd, TILE_N), lambda i, j: (0, j))
    vec_spec = pl.BlockSpec((1, TILE_N), lambda i, j: (0, j))
    stat_spec = pl.BlockSpec((1, 1, TILE_N), lambda i, j: (i, 0, j))
    tile_spec = pl.BlockSpec((TILE_M, TILE_N), lambda i, j: (i, j))
    stat_shape = jax.ShapeDtypeStruct((num_tiles_m, 1, Cpad), jnp.float32)

    # ---------------- pass 1: conv matmul + per-tile partial sum / sumsq -----------------
    if store_act:
        act, sums, sumsqs = pl.pallas_call(
            _stats_store_kernel,
            out_shape=(jax.ShapeDtypeStruct((M_pad, Cpad), jnp.bfloat16), stat_shape, stat_shape),
            grid=(num_tiles_m, num_tiles_n),
            in_specs=[patches_spec, w_spec],
            out_specs=(tile_spec, stat_spec, stat_spec),
            compiler_params=compiler_params,
            cost_estimate=pl.CostEstimate(
                flops=matmul_flops + 4 * M_pad * Cpad,
                transcendentals=0,
                bytes_accessed=(M_pad * Kd * 2 + Kd * Cpad * 2 + M_pad * Cpad * 2
                                + 2 * num_tiles_m * Cpad * 4)),
        )(patches, w_mat)
    else:
        act = None
        sums, sumsqs = pl.pallas_call(
            _stats_recompute_kernel,
            out_shape=(stat_shape, stat_shape),
            grid=(num_tiles_m, num_tiles_n),
            in_specs=[patches_spec, w_spec],
            out_specs=(stat_spec, stat_spec),
            compiler_params=compiler_params,
            cost_estimate=pl.CostEstimate(
                flops=matmul_flops + 3 * M_pad * Cpad,
                transcendentals=0,
                bytes_accessed=(M_pad * Kd * 2 + Kd * Cpad * 2
                                + 2 * num_tiles_m * Cpad * 4)),
        )(patches, w_mat)

    # Tiny reduction + BN fold in plain JAX: per-channel scale/shift.
    mean = jnp.sum(sums, axis=(0, 1)) / M                              # true element count
    var = jnp.maximum(jnp.sum(sumsqs, axis=(0, 1)) / M - mean * mean, 0.0)
    # TODO(synk): E[x^2]-E[x]^2 cancels catastrophically when |mean| >> std; if that regime
    # matters, accumulate the squares around a per-channel pilot shift instead.
    scale = gamma_p * jax.lax.rsqrt(var + BN_EPS)
    shift = beta_p - mean * scale
    scale2d = scale.reshape(1, Cpad)
    shift2d = shift.reshape(1, Cpad)

    # ---------------- pass 2: BN affine (+ residual) + ReLU, bf16 output ----------------
    if residual:
        assert Cin == Cout and Ho == H and Wo == W, "residual requires matching shapes"
        res = x_nhwc.reshape(M, Cout)                                  # already bf16
        res = jnp.pad(res, ((0, M_pad - M), (0, Cpad - Cout)))

    if store_act:
        inputs = [act, scale2d, shift2d]
        in_specs = [tile_spec, vec_spec, vec_spec]
        kernel = _make_apply_elementwise_kernel(residual)
        bytes2 = 2 * M_pad * Cpad * 2 + 2 * Cpad * 4
        flops2 = 4 * M_pad * Cpad
    else:
        inputs = [patches, w_mat, scale2d, shift2d]
        in_specs = [patches_spec, w_spec, vec_spec, vec_spec]
        kernel = _make_apply_recompute_kernel(residual)
        bytes2 = M_pad * Kd * 2 + Kd * Cpad * 2 + M_pad * Cpad * 2 + 2 * Cpad * 4
        flops2 = matmul_flops + 4 * M_pad * Cpad
    if residual:
        inputs.append(res)
        in_specs.append(tile_spec)
        bytes2 += M_pad * Cpad * 2

    out = pl.pallas_call(
        kernel,
        out_shape=jax.ShapeDtypeStruct((M_pad, Cpad), jnp.bfloat16),
        grid=(num_tiles_m, num_tiles_n),
        in_specs=in_specs,
        out_specs=tile_spec,
        compiler_params=compiler_params,
        cost_estimate=pl.CostEstimate(flops=flops2, transcendentals=0, bytes_accessed=bytes2),
    )(*inputs)

    out = out[:M, :Cout].reshape(N, Ho, Wo, Cout)
    # TODO(synk): keep NHWC/bf16 between chained conv blocks; convert only at model boundaries.
    return jnp.transpose(out, (0, 3, 1, 2)).astype(jnp.float32)        # back to NCHW f32


def conv2d_block_reference(x_nchw, weight, bias, gamma, beta, *,
                           stride, padding, residual=False):
    """Pure-JAX reference mirroring the PyTorch module (BN in training mode)."""
    y = jax.lax.conv_general_dilated(
        x_nchw, weight, (stride, stride),
        [(padding, padding), (padding, padding)],
        dimension_numbers=("NCHW", "OIHW", "NCHW"),
        precision=jax.lax.Precision.HIGHEST)
    y = y + bias[None, :, None, None]
    mean = jnp.mean(y, axis=(0, 2, 3), keepdims=True)
    var = jnp.mean((y - mean) ** 2, axis=(0, 2, 3), keepdims=True)
    y = (y - mean) * jax.lax.rsqrt(var + BN_EPS)
    y = y * gamma[None, :, None, None] + beta[None, :, None, None]
    if residual:
        y = y + x_nchw
    return jnp.maximum(y, 0.0)


if __name__ == "__main__":
    # Tolerance vs the fp32/HIGHEST reference: kernel uses bf16 patches/weights on the MXU
    # (f32 accumulation) and bf16 activations/outputs on every HBM surface.
    ATOL = RTOL = 5e-2
    N, H, W = 2, 16, 16
    K, S, P = 3, 1, 1

    # ----- case 1: Conv2d(cin=4, cout=8, k=3, s=1, p=1) — recompute path -----
    Cin, Cout = 4, 8
    k_x, k_w, k_b = jax.random.split(jax.random.PRNGKey(0), 3)
    x = jax.random.normal(k_x, (N, Cin, H, W), dtype=jnp.float32)
    weight = jax.random.normal(k_w, (Cout, Cin, K, K), dtype=jnp.float32) * 0.1
    bias = jax.random.normal(k_b, (Cout,), dtype=jnp.float32) * 0.1
    gamma = jnp.ones((Cout,), jnp.float32)   # BatchNorm2d default affine init
    beta = jnp.zeros((Cout,), jnp.float32)

    out = conv2d_block(x, weight, bias, gamma, beta,
                       kernel_size=K, stride=S, padding=P, residual=False)
    out = jax.block_until_ready(out)
    ref = conv2d_block_reference(x, weight, bias, gamma, beta,
                                 stride=S, padding=P, residual=False)
    assert out.shape == (N, Cout, H, W)
    assert jnp.allclose(out, ref, atol=ATOL, rtol=RTOL)

    # ----- case 2: Conv2d(cin=8, cout=8, residual=True) — recompute path + residual -----
    Cin2 = Cout2 = 8
    k_x2, k_w2, k_b2 = jax.random.split(jax.random.PRNGKey(1), 3)
    x2 = jax.random.normal(k_x2, (N, Cin2, H, W), dtype=jnp.float32)
    weight2 = jax.random.normal(k_w2, (Cout2, Cin2, K, K), dtype=jnp.float32) * 0.1
    bias2 = jax.random.normal(k_b2, (Cout2,), dtype=jnp.float32) * 0.1
    gamma2 = jnp.ones((Cout2,), jnp.float32)
    beta2 = jnp.zeros((Cout2,), jnp.float32)

    out2 = conv2d_block(x2, weight2, bias2, gamma2, beta2,
                        kernel_size=K, stride=S, padding=P, residual=True)
    out2 = jax.block_until_ready(out2)
    ref2 = conv2d_block_reference(x2, weight2, bias2, gamma2, beta2,
                                  stride=S, padding=P, residual=True)
    assert out2.shape == (N, Cout2, H, W)
    assert jnp.allclose(out2, ref2, atol=ATOL, rtol=RTOL)

    # ----- case 3: Conv2d(cin=32, cout=16) — exercises the single-matmul "store" path -----
    Cin3, Cout3 = 32, 16
    k_x3, k_w3, k_b3 = jax.random.split(jax.random.PRNGKey(2), 3)
    x3 = jax.random.normal(k_x3, (N, Cin3, H, W), dtype=jnp.float32)
    weight3 = jax.random.normal(k_w3, (Cout3, Cin3, K, K), dtype=jnp.float32) * 0.1
    bias3 = jax.random.normal(k_b3, (Cout3,), dtype=jnp.float32) * 0.1
    gamma3 = jnp.ones((Cout3,), jnp.float32)
    beta3 = jnp.zeros((Cout3,), jnp.float32)

    out3 = conv2d_block(x3, weight3, bias3, gamma3, beta3,
                        kernel_size=K, stride=S, padding=P, residual=False)
    out3 = jax.block_until_ready(out3)
    ref3 = conv2d_block_reference(x3, weight3, bias3, gamma3, beta3,
                                  stride=S, padding=P, residual=False)
    assert out3.shape == (N, Cout3, H, W)
    assert jnp.allclose(out3, ref3, atol=ATOL, rtol=RTOL)

    print("KERNEL_OK")
</pallas_src>

<mosaic_0001>
module attributes {stable_mosaic.version = 11 : i64} {
  func.func @_stats_recompute_kernel(%arg0: i32, %arg1: i32, %arg2: memref<512x36xbf16, #tpu.memory_space<vmem>>, %arg3: memref<36x128xbf16, #tpu.memory_space<vmem>>, %arg4: memref<1x1x128xf32, #tpu.memory_space<vmem>>, %arg5: memref<1x1x128xf32, #tpu.memory_space<vmem>>) attributes {dimension_semantics = [#tpu.dimension_semantics<parallel>, #tpu.dimension_semantics<parallel>], iteration_bounds = array<i64: 1, 1>, scalar_prefetch = 0 : i64, scratch_operands = 0 : i64, tpu.core_type = #tpu.core_type<tc>, window_params = [{transform_indices = @transform_0, window_bounds = array<i64: 512, 36>}, {transform_indices = @transform_1, window_bounds = array<i64: 36, 128>}, {transform_indices = @transform_2, window_bounds = array<i64: 1, 1, 128>}, {transform_indices = @transform_3, window_bounds = array<i64: 1, 1, 128>}]} {
    %c0 = arith.constant 0 : index
    %c0_0 = arith.constant 0 : index
    %0 = vector.load %arg2[%c0, %c0_0] : memref<512x36xbf16, #tpu.memory_space<vmem>>, vector<512x36xbf16>
    %c0_1 = arith.constant 0 : index
    %c0_2 = arith.constant 0 : index
    %1 = vector.load %arg3[%c0_1, %c0_2] : memref<36x128xbf16, #tpu.memory_space<vmem>>, vector<36x128xbf16>
    %cst = arith.constant dense<0.000000e+00> : vector<512x128xf32>
    %2 = tpu.matmul %0, %1, %cst {dimension_numbers = #tpu.dot_dimension_numbers<[1], [0], [0], [1], [0, 0, 1, 1], [], []>} : vector<512x36xbf16>, vector<36x128xbf16>, vector<512x128xf32> -> vector<512x128xf32>
    %cst_3 = arith.constant dense<0.000000e+00> : vector<128xf32>
    %3 = vector.multi_reduction <add>, %2, %cst_3 [0] : vector<512x128xf32> to vector<128xf32>
    %4 = vector.shape_cast %3 : vector<128xf32> to vector<1x128xf32>
    %c0_4 = arith.constant 0 : index
    %c0_5 = arith.constant 0 : index
    %c0_6 = arith.constant 0 : index
    %5 = vector.load %arg4[%c0_4, %c0_5, %c0_6] : memref<1x1x128xf32, #tpu.memory_space<vmem>>, vector<1x1x128xf32>
    %6 = vector.shape_cast %5 : vector<1x1x128xf32> to vector<1x128xf32>
    %7 = vector.shape_cast %4 : vector<1x128xf32> to vector<1x1x128xf32>
    tpu.vector_store %arg4[%c0_4, %c0_5, %c0_6], %7 {strides = array<i32>} : memref<1x1x128xf32, #tpu.memory_space<vmem>>, vector<1x1x128xf32>,
    %8 = arith.mulf %2, %2 : vector<512x128xf32>
    %cst_7 = arith.constant dense<0.000000e+00> : vector<128xf32>
    %9 = vector.multi_reduction <add>, %8, %cst_7 [0] : vector<512x128xf32> to vector<128xf32>
    %10 = vector.shape_cast %9 : vector<128xf32> to vector<1x128xf32>
    %c0_8 = arith.constant 0 : index
    %c0_9 = arith.constant 0 : index
    %c0_10 = arith.constant 0 : index
    %11 = vector.load %arg5[%c0_8, %c0_9, %c0_10] : memref<1x1x128xf32, #tpu.memory_space<vmem>>, vector<1x1x128xf32>
    %12 = vector.shape_cast %11 : vector<1x1x128xf32> to vector<1x128xf32>
    %13 = vector.shape_cast %10 : vector<1x128xf32> to vector<1x1x128xf32>
    tpu.vector_store %arg5[%c0_8, %c0_9, %c0_10], %13 {strides = array<i32>} : memref<1x1x128xf32, #tpu.memory_space<vmem>>, vector<1x1x128xf32>,
    return
  }
  func.func @transform_0(%arg0: i32, %arg1: i32) -> (i32, i32) {
    %c0_i32 = arith.constant 0 : i32
    %c0_i32_0 = arith.constant 0 : i32
    return %arg0, %c0_i32 : i32, i32
  }
  func.func @transform_1(%arg0: i32, %arg1: i32) -> (i32, i32) {
    %c0_i32 = arith.constant 0 : i32
    %c0_i32_0 = arith.constant 0 : i32
    return %c0_i32, %arg1 : i32, i32
  }
  func.func @transform_2(%arg0: i32, %arg1: i32) -> (i32, i32, i32) {
    %c0_i32 = arith.constant 0 : i32
    %c0_i32_0 = arith.constant 0 : i32
    return %arg0, %c0_i32, %arg1 : i32, i32, i32
  }
  func.func @transform_3(%arg0: i32, %arg1: i32) -> (i32, i32, i32) {
    %c0_i32 = arith.constant 0 : i32
    %c0_i32_0 = arith.constant 0 : i32
    return %arg0, %c0_i32, %arg1 : i32, i32, i32
  }
}

module attributes {stable_mosaic.version = 11 : i64} {
  func.func @kernel(%arg0: i32, %arg1: i32, %arg2: memref<512x36xbf16, #tpu.memory_space<vmem>>, %arg3: memref<36x128xbf16, #tpu.memory_space<vmem>>, %arg4: memref<1x128xf32, #tpu.memory_space<vmem>>, %arg5: memref<1x128xf32, #tpu.memory_space<vmem>>, %arg6: memref<512x128xbf16, #tpu.memory_space<vmem>>) attributes {dimension_semantics = [#tpu.dimension_semantics<parallel>, #tpu.dimension_semantics<parallel>], iteration_bounds = array<i64: 1, 1>, scalar_prefetch = 0 : i64, scratch_operands = 0 : i64, tpu.core_type = #tpu.core_type<tc>, window_params = [{transform_indices = @transform_0, window_bounds = array<i64: 512, 36>}, {transform_indices = @transform_1, window_bounds = array<i64: 36, 128>}, {transform_indices = @transform_2, window_bounds = array<i64: 1, 128>}, {transform_indices = @transform_3, window_bounds = array<i64: 1, 128>}, {transform_indices = @transform_4, window_bounds = array<i64: 512, 128>}]} {
    %c0 = arith.constant 0 : index
    %c0_0 = arith.constant 0 : index
    %0 = vector.load %arg2[%c0, %c0_0] : memref<512x36xbf16, #tpu.memory_space<vmem>>, vector<512x36xbf16>
    %c0_1 = arith.constant 0 : index
    %c0_2 = arith.constant 0 : index
    %1 = vector.load %arg3[%c0_1, %c0_2] : memref<36x128xbf16, #tpu.memory_space<vmem>>, vector<36x128xbf16>
    %cst = arith.constant dense<0.000000e+00> : vector<512x128xf32>
    %2 = tpu.matmul %0, %1, %cst {dimension_numbers = #tpu.dot_dimension_numbers<[1], [0], [0], [1], [0, 0, 1, 1], [], []>} : vector<512x36xbf16>, vector<36x128xbf16>, vector<512x128xf32> -> vector<512x128xf32>
    %c0_3 = arith.constant 0 : index
    %c0_4 = arith.constant 0 : index
    %3 = vector.load %arg4[%c0_3, %c0_4] : memref<1x128xf32, #tpu.memory_space<vmem>>, vector<1x128xf32>
    %4 = vector.broadcast %3 : vector<1x128xf32> to vector<512x128xf32>
    %5 = arith.mulf %2, %4 : vector<512x128xf32>
    %c0_5 = arith.constant 0 : index
    %c0_6 = arith.constant 0 : index
    %6 = vector.load %arg5[%c0_5, %c0_6] : memref<1x128xf32, #tpu.memory_space<vmem>>, vector<1x128xf32>
    %7 = vector.broadcast %6 : vector<1x128xf32> to vector<512x128xf32>
    %8 = arith.addf %5, %7 : vector<512x128xf32>
    %cst_7 = arith.constant 0.000000e+00 : f32
    %9 = vector.broadcast %cst_7 : f32 to vector<512x128xf32>
    %10 = arith.maximumf %8, %9 : vector<512x128xf32>
    %11 = arith.truncf %10 : vector<512x128xf32> to vector<512x128xbf16>
    %c0_8 = arith.constant 0 : index
    %c0_9 = arith.constant 0 : index
    %12 = vector.load %arg6[%c0_8, %c0_9] : memref<512x128xbf16, #tpu.memory_space<vmem>>, vector<512x128xbf16>
    tpu.vector_store %arg6[%c0_8, %c0_9], %11 {strides = array<i32>} : memref<512x128xbf16, #tpu.memory_space<vmem>>, vector<512x128xbf16>,
    return
  }
  func.func @transform_0(%arg0: i32, %arg1: i32) -> (i32, i32) {
    %c0_i32 = arith.constant 0 : i32
    %c0_i32_0 = arith.constant 0 : i32
    return %arg0, %c0_i32 : i32, i32
  }
  func.func @transform_1(%arg0: i32, %arg1: i32) -> (i32, i32) {
    %c0_i32 = arith.constant 0 : i32
    %c0_i32_0 = arith.constant 0 : i32
    return %c0_i32, %arg1 : i32, i32
  }
  func.func @transform_2(%arg0: i32, %arg1: i32) -> (i32, i32) {
    %c0_i32 = arith.constant 0 : i32
    %c0_i32_0 = arith.constant 0 : i32
    return %c0_i32, %arg1 : i32, i32
  }
  func.func @transform_3(%arg0: i32, %arg1: i32) -> (i32, i32) {
    %c0_i32 = arith.constant 0 : i32
    %c0_i32_0 = arith.constant 0 : i32
    return %c0_i32, %arg1 : i32, i32
  }
  func.func @transform_4(%arg0: i32, %arg1: i32) -> (i32, i32) {
    %c0_i32 = arith.constant 0 : i32
    return %arg0, %arg1 : i32, i32
  }
}

</mosaic_0001>

<llo_original>
// kernel: conv2d_block.2
$region0: #{conv2d_block.2}
  #allocation0 [shape = 'u32[]', space=smem, size = 0x4, offset = 0x4, fixed_abs, tag = 'smem constant byte address 0x4 - core index']
  #allocation1 [shape = 'u32[144,128]{1,0:T(1,128)}', space=vmem, size = 0x12000, scoped, tag = 'internal scratch']
  %s0 = inlined_call_operand.hbm [shape: bf16[512,36], index: 0, kind: input, shape index: {}]
  %s1 = inlined_call_operand.hbm [shape: bf16[36,128], index: 1, kind: input, shape index: {}]
  %s2 = inlined_call_operand.hbm [shape: f32[1,1,128], index: 2, kind: output, shape index: {0}]
  %s3 = inlined_call_operand.hbm [shape: f32[1,1,128], index: 3, kind: output, shape index: {1}]
  %4 = xla_tuple %s2, %s3
  %s5 = sld [smem:[#allocation0]]
  $region34: #{conv2d_block.2} parent=0
    _
  %s7 = ssub.s32 1, %s5
  %s8 = scalar_select 0, %s7, %s5
  $region1: #{conv2d_block.2} parent=0
    #allocation2 [shape = 'u8[131072]{0}', space=vmem, size = 0x20000, scoped, tag = 'input window, operand 0, single buffered']
    #allocation3 [shape = 's32[1]{0}', space=sflag, size = 0x4, scoped, tag = 'scoped memory for conv2d_block.2']
    #allocation4 [shape = 's32[1]{0}', space=sflag, size = 0x4, scoped, tag = 'scoped memory for conv2d_block.2']
    #allocation5 [shape = 'u8[10240]{0}', space=vmem, size = 0x2800, scoped, tag = 'input window, operand 1, single buffered']
    #allocation6 [shape = 's32[1]{0}', space=sflag, size = 0x4, scoped, tag = 'scoped memory for conv2d_block.2']
    #allocation7 [shape = 'u8[512]{0}', space=vmem, size = 0x400, scoped, tag = 'output window, operand 0, single buffered']
    #allocation8 [shape = 'u8[512]{0}', space=vmem, size = 0x400, scoped, tag = 'output window, operand 1, single buffered']
    #allocation9 [shape = 's32[1]{0}', space=sflag, size = 0x4, scoped, tag = 'scoped memory for conv2d_block.2']
    %9 = vsyncpa [#allocation3], 0
    %10 = vsyncpa [#allocation6], 0
    %11 = vsyncpa [#allocation4], 0
    %12 = vsyncpa [#allocation9], 0
    // Predicated region
    $region2: #{conv2d_block.2} parent=1 // pred_check
      _
    $region3: #{conv2d_block.2} parent=1 // pred_check_branch
      %14 = sbr.rel (0) target = $region5
    $region4: #{conv2d_block.2} parent=1 // pred_region
      %s16 = ssub.s32 4096, 4096
      %17 = vsyncadd [#allocation3], %s16
      %s18 = sshll.u32 [#allocation2], 4
      %s19 = int_to_ptr.vmem [resolvable:$true] %s18
      %24 = dma.hbm_to_vmem [thread:$0]  %s0, 4096, %s19, [#allocation3], 64, 64, 4
    $region5: #{conv2d_block.2} parent=1 // pred_fallthru
      _
    // Predicated region
    $region6: #{conv2d_block.2} parent=1 // pred_check
      _
    $region7: #{conv2d_block.2} parent=1 // pred_check_branch
      %26 = sbr.rel (0) target = $region9
    $region8: #{conv2d_block.2} parent=1 // pred_region
      %s28 = ssub.s32 320, 320
      %29 = vsyncadd [#allocation6], %s28
      %s30 = sshll.u32 [#allocation5], 4
      %s31 = int_to_ptr.vmem [resolvable:$true] %s30
      %36 = dma.hbm_to_vmem [thread:$0]  %s1, 320, %s31, [#allocation6], 64, 64, 4
    $region9: #{conv2d_block.2} parent=1 // pred_fallthru
      _
    // Predicated region
    $region10: #{conv2d_block.2} parent=1 // pred_check
      _
    $region11: #{conv2d_block.2} parent=1 // pred_check_branch
      %38 = sbr.rel (0) target = $region13
    $region12: #{conv2d_block.2} parent=1 // pred_region
      %39 = dma.done [#allocation3], 4096
    $region13: #{conv2d_block.2} parent=1 // pred_fallthru
      _
    // Predicated region
    $region14: #{conv2d_block.2} parent=1 // pred_check
      _
    $region15: #{conv2d_block.2} parent=1 // pred_check_branch
      %41 = sbr.rel (0) target = $region17
    $region16: #{conv2d_block.2} parent=1 // pred_region
      %42 = dma.done [#allocation6], 320
    $region17: #{conv2d_block.2} parent=1 // pred_fallthru
      _
    %v44 = vld [vmem:[#allocation2] sm:$0xf]
    %v45 = vld [vmem:[#allocation2 + $0x4] sm:$0xf]
    %v46 = vld [vmem:[#allocation2 + $0x8] sm:$0xf]
    %v47 = vld [vmem:[#allocation2 + $0xc] sm:$0xf]
    %v48 = vld [vmem:[#allocation2 + $0x10] sm:$0xf]
    %v49 = vld [vmem:[#allocation2 + $0x14] sm:$0xf]
    %v50 = vld [vmem:[#allocation2 + $0x18] sm:$0xf]
    %v51 = vld [vmem:[#allocation2 + $0x1c] sm:$0xf]
    %v52 = vld [vmem:[#allocation2 + $0x20] sm:$0xf]
    %v53 = vld [vmem:[#allocation2 + $0x24] sm:$0xf]
    %v54 = vld [vmem:[#allocation2 + $0x28] sm:$0xf]
    %v55 = vld [vmem:[#allocation2 + $0x2c] sm:$0xf]
    %v56 = vld [vmem:[#allocation2 + $0x30] sm:$0xf]
    %v57 = vld [vmem:[#allocation2 + $0x34] sm:$0xf]
    %v58 = vld [vmem:[#allocation2 + $0x38] sm:$0xf]
    %v59 = vld [vmem:[#allocation2 + $0x3c] sm:$0xf]
    %v60 = vld [vmem:[#allocation2 + $0x40] sm:$0xf]
    %v61 = vld [vmem:[#allocation2 + $0x44] sm:$0xf]
    %v62 = vld [vmem:[#allocation2 + $0x48] sm:$0xf]
    %v63 = vld [vmem:[#allocation2 + $0x4c] sm:$0xf]
    %v64 = vld [vmem:[#allocation2 + $0x50] sm:$0xf]
    %v65 = vld [vmem:[#allocation2 + $0x54] sm:$0xf]
    %v66 = vld [vmem:[#allocation2 + $0x58] sm:$0xf]
    %v67 = vld [vmem:[#allocation2 + $0x5c] sm:$0xf]
    %v68 = vld [vmem:[#allocation2 + $0x60] sm:$0xf]
    %v69 = vld [vmem:[#allocation2 + $0x64] sm:$0xf]
    %v70 = vld [vmem:[#allocation2 + $0x68] sm:$0xf]
    %v71 = vld [vmem:[#allocation2 + $0x6c] sm:$0xf]
    %v72 = vld [vmem:[#allocation2 + $0x70] sm:$0xf]
    %v73 = vld [vmem:[#allocation2 + $0x74] sm:$0xf]
    %v74 = vld [vmem:[#allocation2 + $0x78] sm:$0xf]
    %v75 = vld [vmem:[#allocation2 + $0x7c] sm:$0xf]
    %v76 = vld [vmem:[#allocation2 + $0x80] sm:$0xf]
    %v77 = vld [vmem:[#allocation2 + $0x84] sm:$0xf]
    %v78 = vld [vmem:[#allocation2 + $0x88] sm:$0xf]
    %v79 = vld [vmem:[#allocation2 + $0x8c] sm:$0xf]
    %v80 = vld [vmem:[#allocation2 + $0x90] sm:$0xf]
    %v81 = vld [vmem:[#allocation2 + $0x94] sm:$0xf]
    %v82 = vld [vmem:[#allocation2 + $0x98] sm:$0xf]
    %v83 = vld [vmem:[#allocation2 + $0x9c] sm:$0xf]
    %v84 = vld [vmem:[#allocation2 + $0xa0] sm:$0xf]
    %v85 = vld [vmem:[#allocation2 + $0xa4] sm:$0xf]
    %v86 = vld [vmem:[#allocation2 + $0xa8] sm:$0xf]
    %v87 = vld [vmem:[#allocation2 + $0xac] sm:$0xf]
    %v88 = vld [vmem:[#allocation2 + $0xb0] sm:$0xf]
    %v89 = vld [vmem:[#allocation2 + $0xb4] sm:$0xf]
    %v90 = vld [vmem:[#allocation2 + $0xb8] sm:$0xf]
    %v91 = vld [vmem:[#allocation2 + $0xbc] sm:$0xf]
    %v92 = vld [vmem:[#allocation2 + $0xc0] sm:$0xf]
    %v93 = vld [vmem:[#allocation2 + $0xc4] sm:$0xf]
    %v94 = vld [vmem:[#allocation2 + $0xc8] sm:$0xf]
    %v95 = vld [vmem:[#allocation2 + $0xcc] sm:$0xf]
    %v96 = vld [vmem:[#allocation2 + $0xd0] sm:$0xf]
    %v97 = vld [vmem:[#allocation2 + $0xd4] sm:$0xf]
    %v98 = vld [vmem:[#allocation2 + $0xd8] sm:$0xf]
    %v99 = vld [vmem:[#allocation2 + $0xdc] sm:$0xf]
    %v100 = vld [vmem:[#allocation2 + $0xe0] sm:$0xf]
    %v101 = vld [vmem:[#allocation2 + $0xe4] sm:$0xf]
    %v102 = vld [vmem:[#allocation2 + $0xe8] sm:$0xf]
    %v103 = vld [vmem:[#allocation2 + $0xec] sm:$0xf]
    %v104 = vld [vmem:[#allocation2 + $0xf0] sm:$0xf]
    %v105 = vld [vmem:[#allocation2 + $0xf4] sm:$0xf]
    %v106 = vld [vmem:[#allocation2 + $0xf8] sm:$0xf]
    %v107 = vld [vmem:[#allocation2 + $0xfc] sm:$0xf]
    %v108 = vld [vmem:[#allocation5] sm:$0xf]
    %v109 = vld [vmem:[#allocation5 + $0x4] sm:$0xf]
    %v110 = vld [vmem:[#allocation5 + $0x8] sm:$0xf]
    %v111 = vld [vmem:[#allocation5 + $0xc] sm:$0xf]
    %v112 = vld [vmem:[#allocation5 + $0x10] sm:$0x3]
    %v177 = vunpack.c.l.b16 %v44
    %v178 = vunpack.c.l.b16 %v45
    %v179 = vunpack.c.l.b16 %v46
    %v180 = vunpack.c.l.b16 %v47
    %v181 = vunpack.c.l.b16 %v48
    %v182 = vunpack.c.l.b16 %v49
    %v183 = vunpack.c.l.b16 %v50
    %v184 = vunpack.c.l.b16 %v51
    %v185 = vunpack.c.l.b16 %v52
    %v186 = vunpack.c.l.b16 %v53
    %v187 = vunpack.c.l.b16 %v54
    %v188 = vunpack.c.l.b16 %v55
    %v189 = vunpack.c.l.b16 %v56
    %v190 = vunpack.c.l.b16 %v57
    %v191 = vunpack.c.l.b16 %v58
    %v192 = vunpack.c.l.b16 %v59
    %v193 = vunpack.c.l.b16 %v60
    %v194 = vunpack.c.l.b16 %v61
    %v195 = vunpack.c.l.b16 %v62
    %v196 = vunpack.c.l.b16 %v63
    %v197 = vunpack.c.l.b16 %v64
    %v198 = vunpack.c.l.b16 %v65
    %v199 = vunpack.c.l.b16 %v66
    %v200 = vunpack.c.l.b16 %v67
    %v201 = vunpack.c.l.b16 %v68
    %v202 = vunpack.c.l.b16 %v69
    %v203 = vunpack.c.l.b16 %v70
    %v204 = vunpack.c.l.b16 %v71
    %v205 = vunpack.c.l.b16 %v72
    %v206 = vunpack.c.l.b16 %v73
    %v207 = vunpack.c.l.b16 %v74
    %v208 = vunpack.c.l.b16 %v75
    %v209 = vunpack.c.l.b16 %v76
    %v210 = vunpack.c.l.b16 %v77
    %v211 = vunpack.c.l.b16 %v78
    %v212 = vunpack.c.l.b16 %v79
    %v213 = vunpack.c.l.b16 %v80
    %v214 = vunpack.c.l.b16 %v81
    %v215 = vunpack.c.l.b16 %v82
    %v216 = vunpack.c.l.b16 %v83
    %v217 = vunpack.c.l.b16 %v84
    %v218 = vunpack.c.l.b16 %v85
    %v219 = vunpack.c.l.b16 %v86
    %v220 = vunpack.c.l.b16 %v87
    %v221 = vunpack.c.l.b16 %v88
    %v222 = vunpack.c.l.b16 %v89
    %v223 = vunpack.c.l.b16 %v90
    %v224 = vunpack.c.l.b16 %v91
    %v225 = vunpack.c.l.b16 %v92
    %v226 = vunpack.c.l.b16 %v93
    %v227 = vunpack.c.l.b16 %v94
    %v228 = vunpack.c.l.b16 %v95
    %v229 = vunpack.c.l.b16 %v96
    %v230 = vunpack.c.l.b16 %v97
    %v231 = vunpack.c.l.b16 %v98
    %v232 = vunpack.c.l.b16 %v99
    %v233 = vunpack.c.l.b16 %v100
    %v234 = vunpack.c.l.b16 %v101
    %v235 = vunpack.c.l.b16 %v102
    %v236 = vunpack.c.l.b16 %v103
    %v237 = vunpack.c.l.b16 %v104
    %v238 = vunpack.c.l.b16 %v105
    %v239 = vunpack.c.l.b16 %v106
    %v240 = vunpack.c.l.b16 %v107
    %v241 = vpack.c.b16 %v178, %v177
    %v242 = vpack.c.b16 %v180, %v179
    %v243 = vpack.c.b16 %v182, %v181
    %v244 = vpack.c.b16 %v184, %v183
    %v245 = vpack.c.b16 %v186, %v185
    %v246 = vpack.c.b16 %v188, %v187
    %v247 = vpack.c.b16 %v190, %v189
    %v248 = vpack.c.b16 %v192, %v191
    %v249 = vpack.c.b16 %v194, %v193
    %v250 = vpack.c.b16 %v196, %v195
    %v251 = vpack.c.b16 %v198, %v197
    %v252 = vpack.c.b16 %v200, %v199
    %v253 = vpack.c.b16 %v202, %v201
    %v254 = vpack.c.b16 %v204, %v203
    %v255 = vpack.c.b16 %v206, %v205
    %v256 = vpack.c.b16 %v208, %v207
    %v257 = vpack.c.b16 %v210, %v209
    %v258 = vpack.c.b16 %v212, %v211
    %v259 = vpack.c.b16 %v214, %v213
    %v260 = vpack.c.b16 %v216, %v215
    %v261 = vpack.c.b16 %v218, %v217
    %v262 = vpack.c.b16 %v220, %v219
    %v263 = vpack.c.b16 %v222, %v221
    %v264 = vpack.c.b16 %v224, %v223
    %v265 = vpack.c.b16 %v226, %v225
    %v266 = vpack.c.b16 %v228, %v227
    %v267 = vpack.c.b16 %v230, %v229
    %v268 = vpack.c.b16 %v232, %v231
    %v269 = vpack.c.b16 %v234, %v233
    %v270 = vpack.c.b16 %v236, %v235
    %v271 = vpack.c.b16 %v238, %v237
    %v272 = vpack.c.b16 %v240, %v239
    %v278 = vunpack.c.l.b16 %v108
    %v279 = vunpack.c.l.b16 %v109
    %v280 = vunpack.c.l.b16 %v110
    %v281 = vunpack.c.l.b16 %v111
    %v282 = vunpack.c.l.b16 %v112
    %v283 = vpack.c.b16 %v279, %v278
    %v284 = vpack.c.b16 %v281, %v280
    %v285 = vpack.c.b16 %v282, %v282
    %vm288 = vcmask 293888
    %v290 = vsel %vm288, %v241, 0
    %v293 = vsel %vm288, %v242, 0
    %v296 = vsel %vm288, %v243, 0
    %v299 = vsel %vm288, %v244, 0
    %v302 = vsel %vm288, %v245, 0
    %v305 = vsel %vm288, %v246, 0
    %v308 = vsel %vm288, %v247, 0
    %v311 = vsel %vm288, %v248, 0
    %v314 = vsel %vm288, %v249, 0
    %v317 = vsel %vm288, %v250, 0
    %v320 = vsel %vm288, %v251, 0
    %v323 = vsel %vm288, %v252, 0
    %v326 = vsel %vm288, %v253, 0
    %v329 = vsel %vm288, %v254, 0
    %v332 = vsel %vm288, %v255, 0
    %v335 = vsel %vm288, %v256, 0
    %v338 = vsel %vm288, %v257, 0
    %v341 = vsel %vm288, %v258, 0
    %v344 = vsel %vm288, %v259, 0
    %v347 = vsel %vm288, %v260, 0
    %v350 = vsel %vm288, %v261, 0
    %v353 = vsel %vm288, %v262, 0
    %v356 = vsel %vm288, %v263, 0
    %v359 = vsel %vm288, %v264, 0
    %v362 = vsel %vm288, %v265, 0
    %v365 = vsel %vm288, %v266, 0
    %v368 = vsel %vm288, %v267, 0
    %v371 = vsel %vm288, %v268, 0
    %v374 = vsel %vm288, %v269, 0
    %v377 = vsel %vm288, %v270, 0
    %v380 = vsel %vm288, %v271, 0
    %v383 = vsel %vm288, %v272, 0
    %vm385 = vcmask 1041408
    %v387 = vsel %vm385, %v285, 0
    %389 = vmatprep.subr.bf16.mxu0 0
    %390 = vmatpush1.bf16.msra.mxu0 %v283
    %391 = vmatprep.subr.bf16.mxu0 0
    %392 = vmatpush1.bf16.msra.mxu0 %v284
    %393 = vmatprep.subr.bf16.mxu0 0
    %394 = vmatpush1.bf16.msra.mxu0 %v387
    %395 = vmatprep.subr.bf16.mxu0 0
    %396 = vmatpush1.bf16.msra.mxu0 0
    %397 = vmatprep.subr.bf16.mxu0 0
    %398 = vmatpush1.bf16.msra.mxu0 0
    %399 = vmatprep.subr.bf16.mxu0 0
    %400 = vmatpush1.bf16.msra.mxu0 0
    %401 = vmatprep.subr.bf16.mxu0 0
    %402 = vmatpush1.bf16.msra.mxu0 0
    %403 = vmatprep.subr.bf16.mxu0 0
    %404 = vmatpush1.bf16.msra.mxu0 0
    %405 = vmatprep.subr.bf16.mxu0 0
    %406 = vmatpush1.bf16.msra.mxu0 0
    %407 = vmatprep.subr.bf16.mxu0 0
    %408 = vmatpush1.bf16.msra.mxu0 0
    %409 = vmatprep.subr.bf16.mxu0 0
    %410 = vmatpush1.bf16.msra.mxu0 0
    %411 = vmatprep.subr.bf16.mxu0 0
    %412 = vmatpush1.bf16.msra.mxu0 0
    %413 = vmatprep.subr.bf16.mxu0 0
    %414 = vmatpush1.bf16.msra.mxu0 0
    %415 = vmatprep.subr.bf16.mxu0 0
    %416 = vmatpush1.bf16.msra.mxu0 0
    %417 = vmatprep.subr.bf16.mxu0 0
    %418 = vmatpush1.bf16.msra.mxu0 0
    %419 = vmatprep.subr.bf16.mxu0 0
    %420 = vmatpush1.bf16.msra.mxu0 0
    %421 = vmatprep.mubr.bf16.mxu0 0
    %422 = vmatmul.mubr.bf16.gmra.mrb[0].mxu0 %v290
    %v423 = vpop.f32.mrb[0].mxu0
    %v424 = vadd.f32 0.0, %v423
    %v425 = vpop.f32.mrb[0].mxu0
    %v426 = vpop.f32.mrb[0].mxu0
    %v427 = vadd.f32 0.0, %v426
    %v428 = vpop.f32.mrb[0].mxu0
    %429 = vmatprep.mubr.bf16.mxu0 0
    %430 = vmatmul.mubr.bf16.gmra.mrb[0].mxu0 %v293
    %v431 = vpop.f32.mrb[0].mxu0
    %v432 = vadd.f32 0.0, %v431
    %v433 = vpop.f32.mrb[0].mxu0
    %v434 = vpop.f32.mrb[0].mxu0
    %v435 = vadd.f32 0.0, %v434
    %v436 = vpop.f32.mrb[0].mxu0
    %437 = vmatprep.mubr.bf16.mxu0 0
    %438 = vmatmul.mubr.bf16.gmra.mrb[0].mxu0 %v296
    %v439 = vpop.f32.mrb[0].mxu0
    %v440 = vadd.f32 0.0, %v439
    %v441 = vpop.f32.mrb[0].mxu0
    %v442 = vpop.f32.mrb[0].mxu0
    %v443 = vadd.f32 0.0, %v442
    %v444 = vpop.f32.mrb[0].mxu0
    %445 = vmatprep.mubr.bf16.mxu0 0
    %446 = vmatmul.mubr.bf16.gmra.mrb[0].mxu0 %v299
    %v447 = vpop.f32.mrb[0].mxu0
    %v448 = vadd.f32 0.0, %v447
    %v449 = vpop.f32.mrb[0].mxu0
    %v450 = vpop.f32.mrb[0].mxu0
    %v451 = vadd.f32 0.0, %v450
    %v452 = vpop.f32.mrb[0].mxu0
    %453 = vmatprep.mubr.bf16.mxu0 0
    %454 = vmatmul.mubr.bf16.gmra.mrb[0].mxu0 %v302
    %v455 = vpop.f32.mrb[0].mxu0
    %v456 = vadd.f32 0.0, %v455
    %v457 = vpop.f32.mrb[0].mxu0
    %v458 = vpop.f32.mrb[0].mxu0
    %v459 = vadd.f32 0.0, %v458
    %v460 = vpop.f32.mrb[0].mxu0
    %461 = vmatprep.mubr.bf16.mxu0 0
    %462 = vmatmul.mubr.bf16.gmra.mrb[0].mxu0 %v305
    %v463 = vpop.f32.mrb[0].mxu0
    %v464 = vadd.f32 0.0, %v463
    %v465 = vpop.f32.mrb[0].mxu0
    %v466 = vpop.f32.mrb[0].mxu0
    %v467 = vadd.f32 0.0, %v466
    %v468 = vpop.f32.mrb[0].mxu0
    %469 = vmatprep.mubr.bf16.mxu0 0
    %470 = vmatmul.mubr.bf16.gmra.mrb[0].mxu0 %v308
    %v471 = vpop.f32.mrb[0].mxu0
    %v472 = vadd.f32 0.0, %v471
    %v473 = vpop.f32.mrb[0].mxu0
    %v474 = vpop.f32.mrb[0].mxu0
    %v475 = vadd.f32 0.0, %v474
    %v476 = vpop.f32.mrb[0].mxu0
    %477 = vmatprep.mubr.bf16.mxu0 0
    %478 = vmatmul.mubr.bf16.gmra.mrb[0].mxu0 %v311
    %v479 = vpop.f32.mrb[0].mxu0
    %v480 = vadd.f32 0.0, %v479
    %v481 = vpop.f32.mrb[0].mxu0
    %v482 = vpop.f32.mrb[0].mxu0
    %v483 = vadd.f32 0.0, %v482
    %v484 = vpop.f32.mrb[0].mxu0
    %485 = vmatprep.mubr.bf16.mxu0 0
    %486 = vmatmul.mubr.bf16.gmra.mrb[0].mxu0 %v314
    %v487 = vpop.f32.mrb[0].mxu0
    %v488 = vadd.f32 0.0, %v487
    %v489 = vpop.f32.mrb[0].mxu0
    %v490 = vpop.f32.mrb[0].mxu0
    %v491 = vadd.f32 0.0, %v490
    %v492 = vpop.f32.mrb[0].mxu0
    %493 = vmatprep.mubr.bf16.mxu0 0
    %494 = vmatmul.mubr.bf16.gmra.mrb[0].mxu0 %v317
    %v495 = vpop.f32.mrb[0].mxu0
    %v496 = vadd.f32 0.0, %v495
    %v497 = vpop.f32.mrb[0].mxu0
    %v498 = vpop.f32.mrb[0].mxu0
    %v499 = vadd.f32 0.0, %v498
    %v500 = vpop.f32.mrb[0].mxu0
    %501 = vmatprep.mubr.bf16.mxu0 0
    %502 = vmatmul.mubr.bf16.gmra.mrb[0].mxu0 %v320
    %v503 = vpop.f32.mrb[0].mxu0
    %v504 = vadd.f32 0.0, %v503
    %v505 = vpop.f32.mrb[0].mxu0
    %v506 = vpop.f32.mrb[0].mxu0
    %v507 = vadd.f32 0.0, %v506
    %v508 = vpop.f32.mrb[0].mxu0
    %509 = vmatprep.mubr.bf16.mxu0 0
    %510 = vmatmul.mubr.bf16.gmra.mrb[0].mxu0 %v323
    %v511 = vpop.f32.mrb[0].mxu0
    %v512 = vadd.f32 0.0, %v511
    %v513 = vpop.f32.mrb[0].mxu0
    %v514 = vpop.f32.mrb[0].mxu0
    %v515 = vadd.f32 0.0, %v514
    %v516 = vpop.f32.mrb[0].mxu0
    %517 = vmatprep.mubr.bf16.mxu0 0
    %518 = vmatmul.mubr.bf16.gmra.mrb[0].mxu0 %v326
    %v519 = vpop.f32.mrb[0].mxu0
    %v520 = vadd.f32 0.0, %v519
    %v521 = vpop.f32.mrb[0].mxu0
    %v522 = vpop.f32.mrb[0].mxu0
    %v523 = vadd.f32 0.0, %v522
    %v524 = vpop.f32.mrb[0].mxu0
    %525 = vmatprep.mubr.bf16.mxu0 0
    %526 = vmatmul.mubr.bf16.gmra.mrb[0].mxu0 %v329
    %v527 = vpop.f32.mrb[0].mxu0
    %v528 = vadd.f32 0.0, %v527
    %v529 = vpop.f32.mrb[0].mxu0
    %v530 = vpop.f32.mrb[0].mxu0
    %v531 = vadd.f32 0.0, %v530
    %v532 = vpop.f32.mrb[0].mxu0
    %533 = vmatprep.mubr.bf16.mxu0 0
    %534 = vmatmul.mubr.bf16.gmra.mrb[0].mxu0 %v332
    %v535 = vpop.f32.mrb[0].mxu0
    %v536 = vadd.f32 0.0, %v535
    %v537 = vpop.f32.mrb[0].mxu0
    %v538 = vpop.f32.mrb[0].mxu0
    %v539 = vadd.f32 0.0, %v538
    %v540 = vpop.f32.mrb[0].mxu0
    %541 = vmatprep.mubr.bf16.mxu0 0
    %542 = vmatmul.mubr.bf16.gmra.mrb[0].mxu0 %v335
    %v543 = vpop.f32.mrb[0].mxu0
    %v544 = vadd.f32 0.0, %v543
    %v545 = vpop.f32.mrb[0].mxu0
    %v546 = vpop.f32.mrb[0].mxu0
    %v547 = vadd.f32 0.0, %v546
    %v548 = vpop.f32.mrb[0].mxu0
    %549 = vmatprep.mubr.bf16.mxu0 0
    %550 = vmatmul.mubr.bf16.gmra.mrb[0].mxu0 %v338
    %v551 = vpop.f32.mrb[0].mxu0
    %v552 = vadd.f32 0.0, %v551
    %v553 = vpop.f32.mrb[0].mxu0
    %v554 = vpop.f32.mrb[0].mxu0
    %v555 = vadd.f32 0.0, %v554
    %v556 = vpop.f32.mrb[0].mxu0
    %557 = vmatprep.mubr.bf16.mxu0 0
    %558 = vmatmul.mubr.bf16.gmra.mrb[0].mxu0 %v341
    %v559 = vpop.f32.mrb[0].mxu0
    %v560 = vadd.f32 0.0, %v559
    %v561 = vpop.f32.mrb[0].mxu0
    %v562 = vpop.f32.mrb[0].mxu0
    %v563 = vadd.f32 0.0, %v562
    %v564 = vpop.f32.mrb[0].mxu0
    %565 = vmatprep.mubr.bf16.mxu0 0
    %566 = vmatmul.mubr.bf16.gmra.mrb[0].mxu0 %v344
    %v567 = vpop.f32.mrb[0].mxu0
    %v568 = vadd.f32 0.0, %v567
    %v569 = vpop.f32.mrb[0].mxu0
    %v570 = vpop.f32.mrb[0].mxu0
    %v571 = vadd.f32 0.0, %v570
    %v572 = vpop.f32.mrb[0].mxu0
    %573 = vmatprep.mubr.bf16.mxu0 0
    %574 = vmatmul.mubr.bf16.gmra.mrb[0].mxu0 %v347
    %v575 = vpop.f32.mrb[0].mxu0
    %v576 = vadd.f32 0.0, %v575
    %v577 = vpop.f32.mrb[0].mxu0
    %v578 = vpop.f32.mrb[0].mxu0
    %v579 = vadd.f32 0.0, %v578
    %v580 = vpop.f32.mrb[0].mxu0
    %581 = vmatprep.mubr.bf16.mxu0 0
    %582 = vmatmul.mubr.bf16.gmra.mrb[0].mxu0 %v350
    %v583 = vpop.f32.mrb[0].mxu0
    %v584 = vadd.f32 0.0, %v583
    %v585 = vpop.f32.mrb[0].mxu0
    %v586 = vpop.f32.mrb[0].mxu0
    %v587 = vadd.f32 0.0, %v586
    %v588 = vpop.f32.mrb[0].mxu0
    %589 = vmatprep.mubr.bf16.mxu0 0
    %590 = vmatmul.mubr.bf16.gmra.mrb[0].mxu0 %v353
    %v591 = vpop.f32.mrb[0].mxu0
    %v592 = vadd.f32 0.0, %v591
    %v593 = vpop.f32.mrb[0].mxu0
    %v594 = vpop.f32.mrb[0].mxu0
    %v595 = vadd.f32 0.0, %v594
    %v596 = vpop.f32.mrb[0].mxu0
    %597 = vmatprep.mubr.bf16.mxu0 0
    %598 = vmatmul.mubr.bf16.gmra.mrb[0].mxu0 %v356
    %v599 = vpop.f32.mrb[0].mxu0
    %v600 = vadd.f32 0.0, %v599
    %v601 = vpop.f32.mrb[0].mxu0
    %v602 = vpop.f32.mrb[0].mxu0
    %v603 = vadd.f32 0.0, %v602
    %v604 = vpop.f32.mrb[0].mxu0
    %605 = vmatprep.mubr.bf16.mxu0 0
    %606 = vmatmul.mubr.bf16.gmra.mrb[0].mxu0 %v359
    %v607 = vpop.f32.mrb[0].mxu0
    %v608 = vadd.f32 0.0, %v607
    %v609 = vpop.f32.mrb[0].mxu0
    %v610 = vpop.f32.mrb[0].mxu0
    %v611 = vadd.f32 0.0, %v610
    %v612 = vpop.f32.mrb[0].mxu0
    %613 = vmatprep.mubr.bf16.mxu0 0
    %614 = vmatmul.mubr.bf16.gmra.mrb[0].mxu0 %v362
    %v615 = vpop.f32.mrb[0].mxu0
    %v616 = vadd.f32 0.0, %v615
    %v617 = vpop.f32.mrb[0].mxu0
    %v618 = vpop.f32.mrb[0].mxu0
    %v619 = vadd.f32 0.0, %v618
    %v620 = vpop.f32.mrb[0].mxu0
    %621 = vmatprep.mubr.bf16.mxu0 0
    %622 = vmatmul.mubr.bf16.gmra.mrb[0].mxu0 %v365
    %v623 = vpop.f32.mrb[0].mxu0
    %v624 = vadd.f32 0.0, %v623
    %v625 = vpop.f32.mrb[0].mxu0
    %v626 = vpop.f32.mrb[0].mxu0
    %v627 = vadd.f32 0.0, %v626
    %v628 = vpop.f32.mrb[0].mxu0
    %629 = vmatprep.mubr.bf16.mxu0 0
    %630 = vmatmul.mubr.bf16.gmra.mrb[0].mxu0 %v368
    %v631 = vpop.f32.mrb[0].mxu0
    %v632 = vadd.f32 0.0, %v631
    %v633 = vpop.f32.mrb[0].mxu0
    %v634 = vpop.f32.mrb[0].mxu0
    %v635 = vadd.f32 0.0, %v634
    %v636 = vpop.f32.mrb[0].mxu0
    %637 = vmatprep.mubr.bf16.mxu0 0
    %638 = vmatmul.mubr.bf16.gmra.mrb[0].mxu0 %v371
    %v639 = vpop.f32.mrb[0].mxu0
    %v640 = vadd.f32 0.0, %v639
    %v641 = vpop.f32.mrb[0].mxu0
    %v642 = vpop.f32.mrb[0].mxu0
    %v643 = vadd.f32 0.0, %v642
    %v644 = vpop.f32.mrb[0].mxu0
    %645 = vmatprep.mubr.bf16.mxu0 0
    %646 = vmatmul.mubr.bf16.gmra.mrb[0].mxu0 %v374
    %v647 = vpop.f32.mrb[0].mxu0
    %v648 = vadd.f32 0.0, %v647
    %v649 = vpop.f32.mrb[0].mxu0
    %v650 = vpop.f32.mrb[0].mxu0
    %v651 = vadd.f32 0.0, %v650
    %v652 = vpop.f32.mrb[0].mxu0
    %653 = vmatprep.mubr.bf16.mxu0 0
    %654 = vmatmul.mubr.bf16.gmra.mrb[0].mxu0 %v377
    %v655 = vpop.f32.mrb[0].mxu0
    %v656 = vadd.f32 0.0, %v655
    %v657 = vpop.f32.mrb[0].mxu0
    %v658 = vpop.f32.mrb[0].mxu0
    %v659 = vadd.f32 0.0, %v658
    %v660 = vpop.f32.mrb[0].mxu0
    %661 = vmatprep.mubr.bf16.mxu0 0
    %662 = vmatmul.mubr.bf16.gmra.mrb[0].mxu0 %v380
    %v663 = vpop.f32.mrb[0].mxu0
    %v664 = vadd.f32 0.0, %v663
    %v665 = vpop.f32.mrb[0].mxu0
    %v666 = vpop.f32.mrb[0].mxu0
    %v667 = vadd.f32 0.0, %v666
    %v668 = vpop.f32.mrb[0].mxu0
    %669 = vmatprep.mubr.bf16.mxu0 0
    %670 = vmatmul.mubr.bf16.gmra.mrb[0].mxu0 %v383
    %v671 = vpop.f32.mrb[0].mxu0
    %v672 = vadd.f32 0.0, %v671
    %v673 = vpop.f32.mrb[0].mxu0
    %v674 = vpop.f32.mrb[0].mxu0
    %v675 = vadd.f32 0.0, %v674
    %v676 = vpop.f32.mrb[0].mxu0
    %677 = vdwg.mxu0
    %v678 = vadd.f32 %v424, %v427
    %v679 = vadd.f32 %v678, %v432
    %v680 = vadd.f32 %v679, %v435
    %v681 = vadd.f32 %v680, %v440
    %v682 = vadd.f32 %v681, %v443
    %v683 = vadd.f32 %v682, %v448
    %v684 = vadd.f32 %v683, %v451
    %v685 = vadd.f32 %v684, %v456
    %v686 = vadd.f32 %v685, %v459
    %v687 = vadd.f32 %v686, %v464
    %v688 = vadd.f32 %v687, %v467
    %v689 = vadd.f32 %v688, %v472
    %v690 = vadd.f32 %v689, %v475
    %v691 = vadd.f32 %v690, %v480
    %v692 = vadd.f32 %v691, %v483
    %v693 = vadd.f32 %v692, %v488
    %v694 = vadd.f32 %v693, %v491
    %v695 = vadd.f32 %v694, %v496
    %v696 = vadd.f32 %v695, %v499
    %v697 = vadd.f32 %v696, %v504
    %v698 = vadd.f32 %v697, %v507
    %v699 = vadd.f32 %v698, %v512
    %v700 = vadd.f32 %v699, %v515
    %v701 = vadd.f32 %v700, %v520
    %v702 = vadd.f32 %v701, %v523
    %v703 = vadd.f32 %v702, %v528
    %v704 = vadd.f32 %v703, %v531
    %v705 = vadd.f32 %v704, %v536
    %v706 = vadd.f32 %v705, %v539
    %v707 = vadd.f32 %v706, %v544
    %v708 = vadd.f32 %v707, %v547
    %v709 = vadd.f32 %v708, %v552
    %v710 = vadd.f32 %v709, %v555
    %v711 = vadd.f32 %v710, %v560
    %v712 = vadd.f32 %v711, %v563
    %v713 = vadd.f32 %v712, %v568
    %v714 = vadd.f32 %v713, %v571
    %v715 = vadd.f32 %v714, %v576
    %v716 = vadd.f32 %v715, %v579
    %v717 = vadd.f32 %v716, %v584
    %v718 = vadd.f32 %v717, %v587
    %v719 = vadd.f32 %v718, %v592
    %v720 = vadd.f32 %v719, %v595
    %v721 = vadd.f32 %v720, %v600
    %v722 = vadd.f32 %v721, %v603
    %v723 = vadd.f32 %v722, %v608
    %v724 = vadd.f32 %v723, %v611
    %v725 = vadd.f32 %v724, %v616
    %v726 = vadd.f32 %v725, %v619
    %v727 = vadd.f32 %v726, %v624
    %v728 = vadd.f32 %v727, %v627
    %v729 = vadd.f32 %v728, %v632
    %v730 = vadd.f32 %v729, %v635
    %v731 = vadd.f32 %v730, %v640
    %v732 = vadd.f32 %v731, %v643
    %v733 = vadd.f32 %v732, %v648
    %v734 = vadd.f32 %v733, %v651
    %v735 = vadd.f32 %v734, %v656
    %v736 = vadd.f32 %v735, %v659
    %v737 = vadd.f32 %v736, %v664
    %v738 = vadd.f32 %v737, %v667
    %v739 = vadd.f32 %v738, %v672
    %v740 = vadd.f32 %v739, %v675
    %v741 = vrot.slane %v740, 4
    %v742 = vadd.f32 %v740, %v741
    %v743 = vrot.slane %v742, 2
    %v744 = vadd.f32 %v742, %v743
    %v745 = vrot.slane %v744, 1
    %v746 = vadd.f32 %v744, %v745
    %747 = vst [vmem:[#allocation7] sm:$0x1] %v746
    %v748 = vmul.f32 %v424, %v424
    %v749 = vmul.f32 %v427, %v427
    %v750 = vmul.f32 %v432, %v432
    %v751 = vmul.f32 %v435, %v435
    %v752 = vmul.f32 %v440, %v440
    %v753 = vmul.f32 %v443, %v443
    %v754 = vmul.f32 %v448, %v448
    %v755 = vmul.f32 %v451, %v451
    %v756 = vmul.f32 %v456, %v456
    %v757 = vmul.f32 %v459, %v459
    %v758 = vmul.f32 %v464, %v464
    %v759 = vmul.f32 %v467, %v467
    %v760 = vmul.f32 %v472, %v472
    %v761 = vmul.f32 %v475, %v475
    %v762 = vmul.f32 %v480, %v480
    %v763 = vmul.f32 %v483, %v483
    %v764 = vmul.f32 %v488, %v488
    %v765 = vmul.f32 %v491, %v491
    %v766 = vmul.f32 %v496, %v496
    %v767 = vmul.f32 %v499, %v499
    %v768 = vmul.f32 %v504, %v504
    %v769 = vmul.f32 %v507, %v507
    %v770 = vmul.f32 %v512, %v512
    %v771 = vmul.f32 %v515, %v515
    %v772 = vmul.f32 %v520, %v520
    %v773 = vmul.f32 %v523, %v523
    %v774 = vmul.f32 %v528, %v528
    %v775 = vmul.f32 %v531, %v531
    %v776 = vmul.f32 %v536, %v536
    %v777 = vmul.f32 %v539, %v539
    %v778 = vmul.f32 %v544, %v544
    %v779 = vmul.f32 %v547, %v547
    %v780 = vmul.f32 %v552, %v552
    %v781 = vmul.f32 %v555, %v555
    %v782 = vmul.f32 %v560, %v560
    %v783 = vmul.f32 %v563, %v563
    %v784 = vmul.f32 %v568, %v568
    %v785 = vmul.f32 %v571, %v571
    %v786 = vmul.f32 %v576, %v576
    %v787 = vmul.f32 %v579, %v579
    %v788 = vmul.f32 %v584, %v584
    %v789 = vmul.f32 %v587, %v587
    %v790 = vmul.f32 %v592, %v592
    %v791 = vmul.f32 %v595, %v595
    %v792 = vmul.f32 %v600, %v600
    %v793 = vmul.f32 %v603, %v603
    %v794 = vmul.f32 %v608, %v608
    %v795 = vmul.f32 %v611, %v611
    %v796 = vmul.f32 %v616, %v616
    %v797 = vmul.f32 %v619, %v619
    %v798 = vmul.f32 %v624, %v624
    %v799 = vmul.f32 %v627, %v627
    %v800 = vmul.f32 %v632, %v632
    %v801 = vmul.f32 %v635, %v635
    %v802 = vmul.f32 %v640, %v640
    %v803 = vmul.f32 %v643, %v643
    %v804 = vmul.f32 %v648, %v648
    %v805 = vmul.f32 %v651, %v651
    %v806 = vmul.f32 %v656, %v656
    %v807 = vmul.f32 %v659, %v659
    %v808 = vmul.f32 %v664, %v664
    %v809 = vmul.f32 %v667, %v667
    %v810 = vmul.f32 %v672, %v672
    %v811 = vmul.f32 %v675, %v675
    %v812 = vadd.f32 %v748, %v749
    %v813 = vadd.f32 %v812, %v750
    %v814 = vadd.f32 %v813, %v751
    %v815 = vadd.f32 %v814, %v752
    %v816 = vadd.f32 %v815, %v753
    %v817 = vadd.f32 %v816, %v754
    %v818 = vadd.f32 %v817, %v755
    %v819 = vadd.f32 %v818, %v756
    %v820 = vadd.f32 %v819, %v757
    %v821 = vadd.f32 %v820, %v758
    %v822 = vadd.f32 %v821, %v759
    %v823 = vadd.f32 %v822, %v760
    %v824 = vadd.f32 %v823, %v761
    %v825 = vadd.f32 %v824, %v762
    %v826 = vadd.f32 %v825, %v763
    %v827 = vadd.f32 %v826, %v764
    %v828 = vadd.f32 %v827, %v765
    %v829 = vadd.f32 %v828, %v766
    %v830 = vadd.f32 %v829, %v767
    %v831 = vadd.f32 %v830, %v768
    %v832 = vadd.f32 %v831, %v769
    %v833 = vadd.f32 %v832, %v770
    %v834 = vadd.f32 %v833, %v771
    %v835 = vadd.f32 %v834, %v772
    %v836 = vadd.f32 %v835, %v773
    %v837 = vadd.f32 %v836, %v774
    %v838 = vadd.f32 %v837, %v775
    %v839 = vadd.f32 %v838, %v776
    %v840 = vadd.f32 %v839, %v777
    %v841 = vadd.f32 %v840, %v778
    %v842 = vadd.f32 %v841, %v779
    %v843 = vadd.f32 %v842, %v780
    %v844 = vadd.f32 %v843, %v781
    %v845 = vadd.f32 %v844, %v782
    %v846 = vadd.f32 %v845, %v783
    %v847 = vadd.f32 %v846, %v784
    %v848 = vadd.f32 %v847, %v785
    %v849 = vadd.f32 %v848, %v786
    %v850 = vadd.f32 %v849, %v787
    %v851 = vadd.f32 %v850, %v788
    %v852 = vadd.f32 %v851, %v789
    %v853 = vadd.f32 %v852, %v790
    %v854 = vadd.f32 %v853, %v791
    %v855 = vadd.f32 %v854, %v792
    %v856 = vadd.f32 %v855, %v793
    %v857 = vadd.f32 %v856, %v794
    %v858 = vadd.f32 %v857, %v795
    %v859 = vadd.f32 %v858, %v796
    %v860 = vadd.f32 %v859, %v797
    %v861 = vadd.f32 %v860, %v798
    %v862 = vadd.f32 %v861, %v799
    %v863 = vadd.f32 %v862, %v800
    %v864 = vadd.f32 %v863, %v801
    %v865 = vadd.f32 %v864, %v802
    %v866 = vadd.f32 %v865, %v803
    %v867 = vadd.f32 %v866, %v804
    %v868 = vadd.f32 %v867, %v805
    %v869 = vadd.f32 %v868, %v806
    %v870 = vadd.f32 %v869, %v807
    %v871 = vadd.f32 %v870, %v808
    %v872 = vadd.f32 %v871, %v809
    %v873 = vadd.f32 %v872, %v810
    %v874 = vadd.f32 %v873, %v811
    %v875 = vrot.slane %v874, 4
    %v876 = vadd.f32 %v874, %v875
    %v877 = vrot.slane %v876, 2
    %v878 = vadd.f32 %v876, %v877
    %v879 = vrot.slane %v878, 1
    %v880 = vadd.f32 %v878, %v879
    %881 = vst [vmem:[#allocation8] sm:$0x1] %v880
    // Predicated region
    $region18: #{conv2d_block.2} parent=1 // pred_check
      _
    $region19: #{conv2d_block.2} parent=1 // pred_check_branch
      %883 = sbr.rel (0) target = $region21
    $region20: #{conv2d_block.2} parent=1 // pred_region
      %s885 = ssub.s32 16, 16
      %886 = vsyncadd [#allocation4], %s885
      %s888 = sshll.u32 [#allocation7], 4
      %s889 = int_to_ptr.vmem [resolvable:$true] %s888
      %891 = dma.vmem_to_hbm [thread:$0]  %s889, 16, %s2, [#allocation4]
    $region21: #{conv2d_block.2} parent=1 // pred_fallthru
      _
    // Predicated region
    $region22: #{conv2d_block.2} parent=1 // pred_check
      _
    $region23: #{conv2d_block.2} parent=1 // pred_check_branch
      %893 = sbr.rel (0) target = $region25
    $region24: #{conv2d_block.2} parent=1 // pred_region
      %s895 = ssub.s32 16, 16
      %896 = vsyncadd [#allocation9], %s895
      %s898 = sshll.u32 [#allocation8], 4
      %s899 = int_to_ptr.vmem [resolvable:$true] %s898
      %901 = dma.vmem_to_hbm [thread:$0]  %s899, 16, %s3, [#allocation9]
    $region25: #{conv2d_block.2} parent=1 // pred_fallthru
      _
    // Predicated region
    $region26: #{conv2d_block.2} parent=1 // pred_check
      _
    $region27: #{conv2d_block.2} parent=1 // pred_check_branch
      %903 = sbr.rel (0) target = $region29
    $region28: #{conv2d_block.2} parent=1 // pred_region
      %904 = dma.done [#allocation4], 16
    $region29: #{conv2d_block.2} parent=1 // pred_fallthru
      _
    // Predicated region
    $region30: #{conv2d_block.2} parent=1 // pred_check
      _
    $region31: #{conv2d_block.2} parent=1 // pred_check_branch
      %906 = sbr.rel (0) target = $region33
    $region32: #{conv2d_block.2} parent=1 // pred_region
      %907 = dma.done [#allocation9], 16
    $region33: #{conv2d_block.2} parent=1 // pred_fallthru
      _
    %908 = vsyncpa [#allocation3], 1
    %909 = vsyncpa [#allocation6], 1
    %910 = vsyncpa [#allocation4], 1
    %911 = vsyncpa [#allocation9], 1

// kernel: conv2d_block.3
$region0: #{conv2d_block.3}
  #allocation0 [shape = 'u32[]', space=smem, size = 0x4, offset = 0x4, fixed_abs, tag = 'smem constant byte address 0x4 - core index']
  #allocation1 [shape = 'u32[144,128]{1,0:T(1,128)}', space=vmem, size = 0x12000, scoped, tag = 'internal scratch']
  %s0 = inlined_call_operand.hbm [shape: bf16[512,36], index: 0, kind: input, shape index: {}]
  %s1 = inlined_call_operand.hbm [shape: bf16[36,128], index: 1, kind: input, shape index: {}]
  %s2 = inlined_call_operand.hbm [shape: f32[1,128], index: 2, kind: input, shape index: {}]
  %s3 = inlined_call_operand.hbm [shape: f32[1,128], index: 3, kind: input, shape index: {}]
  %s4 = inlined_call_operand.hbm [shape: bf16[512,128], index: 4, kind: output, shape index: {}]
  %s5 = sld [smem:[#allocation0]]
  $region42: #{conv2d_block.3} parent=0
    _
  %s7 = ssub.s32 1, %s5
  %s8 = scalar_select 0, %s7, %s5
  $region1: #{conv2d_block.3} parent=0
    #allocation2 [shape = 'u8[131072]{0}', space=vmem, size = 0x20000, scoped, tag = 'input window, operand 0, single buffered']
    #allocation3 [shape = 's32[1]{0}', space=sflag, size = 0x4, scoped, tag = 'scoped memory for conv2d_block.3']
    #allocation4 [shape = 's32[1]{0}', space=sflag, size = 0x4, scoped, tag = 'scoped memory for conv2d_block.3']
    #allocation5 [shape = 'u8[10240]{0}', space=vmem, size = 0x2800, scoped, tag = 'input window, operand 1, single buffered']
    #allocation6 [shape = 's32[1]{0}', space=sflag, size = 0x4, scoped, tag = 'scoped memory for conv2d_block.3']
    #allocation7 [shape = 'u8[512]{0}', space=vmem, size = 0x400, scoped, tag = 'input window, operand 2, single buffered']
    #allocation8 [shape = 'u8[512]{0}', space=vmem, size = 0x400, scoped, tag = 'input window, operand 3, single buffered']
    #allocation9 [shape = 's32[1]{0}', space=sflag, size = 0x4, scoped, tag = 'scoped memory for conv2d_block.3']
    #allocation10 [shape = 'u8[131072]{0}', space=vmem, size = 0x20000, scoped, tag = 'output window, operand 0, single buffered']
    %9 = vsyncpa [#allocation3], 0
    %10 = vsyncpa [#allocation6], 0
    %11 = vsyncpa [#allocation9], 0
    %12 = vsyncpa [#allocation4], 0
    // Predicated region
    $region2: #{conv2d_block.3} parent=1 // pred_check
      _
    $region3: #{conv2d_block.3} parent=1 // pred_check_branch
      %14 = sbr.rel (0) target = $region5
    $region4: #{conv2d_block.3} parent=1 // pred_region
      %s16 = ssub.s32 4096, 4096
      %17 = vsyncadd [#allocation3], %s16
      %s18 = sshll.u32 [#allocation2], 4
      %s19 = int_to_ptr.vmem [resolvable:$true] %s18
      %24 = dma.hbm_to_vmem [thread:$0]  %s0, 4096, %s19, [#allocation3], 64, 64, 4
    $region5: #{conv2d_block.3} parent=1 // pred_fallthru
      _
    // Predicated region
    $region6: #{conv2d_block.3} parent=1 // pred_check
      _
    $region7: #{conv2d_block.3} parent=1 // pred_check_branch
      %26 = sbr.rel (0) target = $region9
    $region8: #{conv2d_block.3} parent=1 // pred_region
      %s28 = ssub.s32 320, 320
      %29 = vsyncadd [#allocation6], %s28
      %s30 = sshll.u32 [#allocation5], 4
      %s31 = int_to_ptr.vmem [resolvable:$true] %s30
      %36 = dma.hbm_to_vmem [thread:$0]  %s1, 320, %s31, [#allocation6], 64, 64, 4
    $region9: #{conv2d_block.3} parent=1 // pred_fallthru
      _
    // Predicated region
    $region10: #{conv2d_block.3} parent=1 // pred_check
      _
    $region11: #{conv2d_block.3} parent=1 // pred_check_branch
      %38 = sbr.rel (0) target = $region13
    $region12: #{conv2d_block.3} parent=1 // pred_region
      %s40 = ssub.s32 16, 16
      %41 = vsyncadd [#allocation6], %s40
      %s43 = sshll.u32 [#allocation7], 4
      %s44 = int_to_ptr.vmem [resolvable:$true] %s43
      %46 = dma.hbm_to_vmem [thread:$0]  %s2, 16, %s44, [#allocation6]
    $region13: #{conv2d_block.3} parent=1 // pred_fallthru
      _
    // Predicated region
    $region14: #{conv2d_block.3} parent=1 // pred_check
      _
    $region15: #{conv2d_block.3} parent=1 // pred_check_branch
      %48 = sbr.rel (0) target = $region17
    $region16: #{conv2d_block.3} parent=1 // pred_region
      %s50 = ssub.s32 16, 16
      %51 = vsyncadd [#allocation9], %s50
      %s53 = sshll.u32 [#allocation8], 4
      %s54 = int_to_ptr.vmem [resolvable:$true] %s53
      %56 = dma.hbm_to_vmem [thread:$0]  %s3, 16, %s54, [#allocation9]
    $region17: #{conv2d_block.3} parent=1 // pred_fallthru
      _
    // Predicated region
    $region18: #{conv2d_block.3} parent=1 // pred_check
      _
    $region19: #{conv2d_block.3} parent=1 // pred_check_branch
      %58 = sbr.rel (0) target = $region21
    $region20: #{conv2d_block.3} parent=1 // pred_region
      %59 = dma.done [#allocation3], 4096
    $region21: #{conv2d_block.3} parent=1 // pred_fallthru
      _
    // Predicated region
    $region22: #{conv2d_block.3} parent=1 // pred_check
      _
    $region23: #{conv2d_block.3} parent=1 // pred_check_branch
      %61 = sbr.rel (0) target = $region25
    $region24: #{conv2d_block.3} parent=1 // pred_region
      %62 = dma.done [#allocation6], 320
    $region25: #{conv2d_block.3} parent=1 // pred_fallthru
      _
    // Predicated region
    $region26: #{conv2d_block.3} parent=1 // pred_check
      _
    $region27: #{conv2d_block.3} parent=1 // pred_check_branch
      %64 = sbr.rel (0) target = $region29
    $region28: #{conv2d_block.3} parent=1 // pred_region
      %65 = dma.done [#allocation6], 16
    $region29: #{conv2d_block.3} parent=1 // pred_fallthru
      _
    // Predicated region
    $region30: #{conv2d_block.3} parent=1 // pred_check
      _
    $region31: #{conv2d_block.3} parent=1 // pred_check_branch
      %67 = sbr.rel (0) target = $region33
    $region32: #{conv2d_block.3} parent=1 // pred_region
      %68 = dma.done [#allocation9], 16
    $region33: #{conv2d_block.3} parent=1 // pred_fallthru
      _
    %v70 = vld [vmem:[#allocation2] sm:$0xf]
    %v71 = vld [vmem:[#allocation2 + $0x4] sm:$0xf]
    %v72 = vld [vmem:[#allocation2 + $0x8] sm:$0xf]
    %v73 = vld [vmem:[#allocation2 + $0xc] sm:$0xf]
    %v74 = vld [vmem:[#allocation2 + $0x10] sm:$0xf]
    %v75 = vld [vmem:[#allocation2 + $0x14] sm:$0xf]
    %v76 = vld [vmem:[#allocation2 + $0x18] sm:$0xf]
    %v77 = vld [vmem:[#allocation2 + $0x1c] sm:$0xf]
    %v78 = vld [vmem:[#allocation2 + $0x20] sm:$0xf]
    %v79 = vld [vmem:[#allocation2 + $0x24] sm:$0xf]
    %v80 = vld [vmem:[#allocation2 + $0x28] sm:$0xf]
    %v81 = vld [vmem:[#allocation2 + $0x2c] sm:$0xf]
    %v82 = vld [vmem:[#allocation2 + $0x30] sm:$0xf]
    %v83 = vld [vmem:[#allocation2 + $0x34] sm:$0xf]
    %v84 = vld [vmem:[#allocation2 + $0x38] sm:$0xf]
    %v85 = vld [vmem:[#allocation2 + $0x3c] sm:$0xf]
    %v86 = vld [vmem:[#allocation2 + $0x40] sm:$0xf]
    %v87 = vld [vmem:[#allocation2 + $0x44] sm:$0xf]
    %v88 = vld [vmem:[#allocation2 + $0x48] sm:$0xf]
    %v89 = vld [vmem:[#allocation2 + $0x4c] sm:$0xf]
    %v90 = vld [vmem:[#allocation2 + $0x50] sm:$0xf]
    %v91 = vld [vmem:[#allocation2 + $0x54] sm:$0xf]
    %v92 = vld [vmem:[#allocation2 + $0x58] sm:$0xf]
    %v93 = vld [vmem:[#allocation2 + $0x5c] sm:$0xf]
    %v94 = vld [vmem:[#allocation2 + $0x60] sm:$0xf]
    %v95 = vld [vmem:[#allocation2 + $0x64] sm:$0xf]
    %v96 = vld [vmem:[#allocation2 + $0x68] sm:$0xf]
    %v97 = vld [vmem:[#allocation2 + $0x6c] sm:$0xf]
    %v98 = vld [vmem:[#allocation2 + $0x70] sm:$0xf]
    %v99 = vld [vmem:[#allocation2 + $0x74] sm:$0xf]
    %v100 = vld [vmem:[#allocation2 + $0x78] sm:$0xf]
    %v101 = vld [vmem:[#allocation2 + $0x7c] sm:$0xf]
    %v102 = vld [vmem:[#allocation2 + $0x80] sm:$0xf]
    %v103 = vld [vmem:[#allocation2 + $0x84] sm:$0xf]
    %v104 = vld [vmem:[#allocation2 + $0x88] sm:$0xf]
    %v105 = vld [vmem:[#allocation2 + $0x8c] sm:$0xf]
    %v106 = vld [vmem:[#allocation2 + $0x90] sm:$0xf]
    %v107 = vld [vmem:[#allocation2 + $0x94] sm:$0xf]
    %v108 = vld [vmem:[#allocation2 + $0x98] sm:$0xf]
    %v109 = vld [vmem:[#allocation2 + $0x9c] sm:$0xf]
    %v110 = vld [vmem:[#allocation2 + $0xa0] sm:$0xf]
    %v111 = vld [vmem:[#allocation2 + $0xa4] sm:$0xf]
    %v112 = vld [vmem:[#allocation2 + $0xa8] sm:$0xf]
    %v113 = vld [vmem:[#allocation2 + $0xac] sm:$0xf]
    %v114 = vld [vmem:[#allocation2 + $0xb0] sm:$0xf]
    %v115 = vld [vmem:[#allocation2 + $0xb4] sm:$0xf]
    %v116 = vld [vmem:[#allocation2 + $0xb8] sm:$0xf]
    %v117 = vld [vmem:[#allocation2 + $0xbc] sm:$0xf]
    %v118 = vld [vmem:[#allocation2 + $0xc0] sm:$0xf]
    %v119 = vld [vmem:[#allocation2 + $0xc4] sm:$0xf]
    %v120 = vld [vmem:[#allocation2 + $0xc8] sm:$0xf]
    %v121 = vld [vmem:[#allocation2 + $0xcc] sm:$0xf]
    %v122 = vld [vmem:[#allocation2 + $0xd0] sm:$0xf]
    %v123 = vld [vmem:[#allocation2 + $0xd4] sm:$0xf]
    %v124 = vld [vmem:[#allocation2 + $0xd8] sm:$0xf]
    %v125 = vld [vmem:[#allocation2 + $0xdc] sm:$0xf]
    %v126 = vld [vmem:[#allocation2 + $0xe0] sm:$0xf]
    %v127 = vld [vmem:[#allocation2 + $0xe4] sm:$0xf]
    %v128 = vld [vmem:[#allocation2 + $0xe8] sm:$0xf]
    %v129 = vld [vmem:[#allocation2 + $0xec] sm:$0xf]
    %v130 = vld [vmem:[#allocation2 + $0xf0] sm:$0xf]
    %v131 = vld [vmem:[#allocation2 + $0xf4] sm:$0xf]
    %v132 = vld [vmem:[#allocation2 + $0xf8] sm:$0xf]
    %v133 = vld [vmem:[#allocation2 + $0xfc] sm:$0xf]
    %v134 = vld [vmem:[#allocation5] sm:$0xf]
    %v135 = vld [vmem:[#allocation5 + $0x4] sm:$0xf]
    %v136 = vld [vmem:[#allocation5 + $0x8] sm:$0xf]
    %v137 = vld [vmem:[#allocation5 + $0xc] sm:$0xf]
    %v138 = vld [vmem:[#allocation5 + $0x10] sm:$0x3]
    %v203 = vunpack.c.l.b16 %v70
    %v204 = vunpack.c.l.b16 %v71
    %v205 = vunpack.c.l.b16 %v72
    %v206 = vunpack.c.l.b16 %v73
    %v207 = vunpack.c.l.b16 %v74
    %v208 = vunpack.c.l.b16 %v75
    %v209 = vunpack.c.l.b16 %v76
    %v210 = vunpack.c.l.b16 %v77
    %v211 = vunpack.c.l.b16 %v78
    %v212 = vunpack.c.l.b16 %v79
    %v213 = vunpack.c.l.b16 %v80
    %v214 = vunpack.c.l.b16 %v81
    %v215 = vunpack.c.l.b16 %v82
    %v216 = vunpack.c.l.b16 %v83
    %v217 = vunpack.c.l.b16 %v84
    %v218 = vunpack.c.l.b16 %v85
    %v219 = vunpack.c.l.b16 %v86
    %v220 = vunpack.c.l.b16 %v87
    %v221 = vunpack.c.l.b16 %v88
    %v222 = vunpack.c.l.b16 %v89
    %v223 = vunpack.c.l.b16 %v90
    %v224 = vunpack.c.l.b16 %v91
    %v225 = vunpack.c.l.b16 %v92
    %v226 = vunpack.c.l.b16 %v93
    %v227 = vunpack.c.l.b16 %v94
    %v228 = vunpack.c.l.b16 %v95
    %v229 = vunpack.c.l.b16 %v96
    %v230 = vunpack.c.l.b16 %v97
    %v231 = vunpack.c.l.b16 %v98
    %v232 = vunpack.c.l.b16 %v99
    %v233 = vunpack.c.l.b16 %v100
    %v234 = vunpack.c.l.b16 %v101
    %v235 = vunpack.c.l.b16 %v102
    %v236 = vunpack.c.l.b16 %v103
    %v237 = vunpack.c.l.b16 %v104
    %v238 = vunpack.c.l.b16 %v105
    %v239 = vunpack.c.l.b16 %v106
    %v240 = vunpack.c.l.b16 %v107
    %v241 = vunpack.c.l.b16 %v108
    %v242 = vunpack.c.l.b16 %v109
    %v243 = vunpack.c.l.b16 %v110
    %v244 = vunpack.c.l.b16 %v111
    %v245 = vunpack.c.l.b16 %v112
    %v246 = vunpack.c.l.b16 %v113
    %v247 = vunpack.c.l.b16 %v114
    %v248 = vunpack.c.l.b16 %v115
    %v249 = vunpack.c.l.b16 %v116
    %v250 = vunpack.c.l.b16 %v117
    %v251 = vunpack.c.l.b16 %v118
    %v252 = vunpack.c.l.b16 %v119
    %v253 = vunpack.c.l.b16 %v120
    %v254 = vunpack.c.l.b16 %v121
    %v255 = vunpack.c.l.b16 %v122
    %v256 = vunpack.c.l.b16 %v123
    %v257 = vunpack.c.l.b16 %v124
    %v258 = vunpack.c.l.b16 %v125
    %v259 = vunpack.c.l.b16 %v126
    %v260 = vunpack.c.l.b16 %v127
    %v261 = vunpack.c.l.b16 %v128
    %v262 = vunpack.c.l.b16 %v129
    %v263 = vunpack.c.l.b16 %v130
    %v264 = vunpack.c.l.b16 %v131
    %v265 = vunpack.c.l.b16 %v132
    %v266 = vunpack.c.l.b16 %v133
    %v267 = vpack.c.b16 %v204, %v203
    %v268 = vpack.c.b16 %v206, %v205
    %v269 = vpack.c.b16 %v208, %v207
    %v270 = vpack.c.b16 %v210, %v209
    %v271 = vpack.c.b16 %v212, %v211
    %v272 = vpack.c.b16 %v214, %v213
    %v273 = vpack.c.b16 %v216, %v215
    %v274 = vpack.c.b16 %v218, %v217
    %v275 = vpack.c.b16 %v220, %v219
    %v276 = vpack.c.b16 %v222, %v221
    %v277 = vpack.c.b16 %v224, %v223
    %v278 = vpack.c.b16 %v226, %v225
    %v279 = vpack.c.b16 %v228, %v227
    %v280 = vpack.c.b16 %v230, %v229
    %v281 = vpack.c.b16 %v232, %v231
    %v282 = vpack.c.b16 %v234, %v233
    %v283 = vpack.c.b16 %v236, %v235
    %v284 = vpack.c.b16 %v238, %v237
    %v285 = vpack.c.b16 %v240, %v239
    %v286 = vpack.c.b16 %v242, %v241
    %v287 = vpack.c.b16 %v244, %v243
    %v288 = vpack.c.b16 %v246, %v245
    %v289 = vpack.c.b16 %v248, %v247
    %v290 = vpack.c.b16 %v250, %v249
    %v291 = vpack.c.b16 %v252, %v251
    %v292 = vpack.c.b16 %v254, %v253
    %v293 = vpack.c.b16 %v256, %v255
    %v294 = vpack.c.b16 %v258, %v257
    %v295 = vpack.c.b16 %v260, %v259
    %v296 = vpack.c.b16 %v262, %v261
    %v297 = vpack.c.b16 %v264, %v263
    %v298 = vpack.c.b16 %v266, %v265
    %v304 = vunpack.c.l.b16 %v134
    %v305 = vunpack.c.l.b16 %v135
    %v306 = vunpack.c.l.b16 %v136
    %v307 = vunpack.c.l.b16 %v137
    %v308 = vunpack.c.l.b16 %v138
    %v309 = vpack.c.b16 %v305, %v304
    %v310 = vpack.c.b16 %v307, %v306
    %v311 = vpack.c.b16 %v308, %v308
    %vm314 = vcmask 293888
    %v316 = vsel %vm314, %v267, 0
    %v319 = vsel %vm314, %v268, 0
    %v322 = vsel %vm314, %v269, 0
    %v325 = vsel %vm314, %v270, 0
    %v328 = vsel %vm314, %v271, 0
    %v331 = vsel %vm314, %v272, 0
    %v334 = vsel %vm314, %v273, 0
    %v337 = vsel %vm314, %v274, 0
    %v340 = vsel %vm314, %v275, 0
    %v343 = vsel %vm314, %v276, 0
    %v346 = vsel %vm314, %v277, 0
    %v349 = vsel %vm314, %v278, 0
    %v352 = vsel %vm314, %v279, 0
    %v355 = vsel %vm314, %v280, 0
    %v358 = vsel %vm314, %v281, 0
    %v361 = vsel %vm314, %v282, 0
    %v364 = vsel %vm314, %v283, 0
    %v367 = vsel %vm314, %v284, 0
    %v370 = vsel %vm314, %v285, 0
    %v373 = vsel %vm314, %v286, 0
    %v376 = vsel %vm314, %v287, 0
    %v379 = vsel %vm314, %v288, 0
    %v382 = vsel %vm314, %v289, 0
    %v385 = vsel %vm314, %v290, 0
    %v388 = vsel %vm314, %v291, 0
    %v391 = vsel %vm314, %v292, 0
    %v394 = vsel %vm314, %v293, 0
    %v397 = vsel %vm314, %v294, 0
    %v400 = vsel %vm314, %v295, 0
    %v403 = vsel %vm314, %v296, 0
    %v406 = vsel %vm314, %v297, 0
    %v409 = vsel %vm314, %v298, 0
    %vm411 = vcmask 1041408
    %v413 = vsel %vm411, %v311, 0
    %415 = vmatprep.subr.bf16.mxu0 0
    %416 = vmatpush1.bf16.msra.mxu0 %v309
    %417 = vmatprep.subr.bf16.mxu0 0
    %418 = vmatpush1.bf16.msra.mxu0 %v310
    %419 = vmatprep.subr.bf16.mxu0 0
    %420 = vmatpush1.bf16.msra.mxu0 %v413
    %421 = vmatprep.subr.bf16.mxu0 0
    %422 = vmatpush1.bf16.msra.mxu0 0
    %423 = vmatprep.subr.bf16.mxu0 0
    %424 = vmatpush1.bf16.msra.mxu0 0
    %425 = vmatprep.subr.bf16.mxu0 0
    %426 = vmatpush1.bf16.msra.mxu0 0
    %427 = vmatprep.subr.bf16.mxu0 0
    %428 = vmatpush1.bf16.msra.mxu0 0
    %429 = vmatprep.subr.bf16.mxu0 0
    %430 = vmatpush1.bf16.msra.mxu0 0
    %431 = vmatprep.subr.bf16.mxu0 0
    %432 = vmatpush1.bf16.msra.mxu0 0
    %433 = vmatprep.subr.bf16.mxu0 0
    %434 = vmatpush1.bf16.msra.mxu0 0
    %435 = vmatprep.subr.bf16.mxu0 0
    %436 = vmatpush1.bf16.msra.mxu0 0
    %437 = vmatprep.subr.bf16.mxu0 0
    %438 = vmatpush1.bf16.msra.mxu0 0
    %439 = vmatprep.subr.bf16.mxu0 0
    %440 = vmatpush1.bf16.msra.mxu0 0
    %441 = vmatprep.subr.bf16.mxu0 0
    %442 = vmatpush1.bf16.msra.mxu0 0
    %443 = vmatprep.subr.bf16.mxu0 0
    %444 = vmatpush1.bf16.msra.mxu0 0
    %445 = vmatprep.subr.bf16.mxu0 0
    %446 = vmatpush1.bf16.msra.mxu0 0
    %447 = vmatprep.mubr.bf16.mxu0 0
    %448 = vmatmul.mubr.bf16.gmra.mrb[0].mxu0 %v316
    %v449 = vpop.f32.mrb[0].mxu0
    %v450 = vadd.f32 0.0, %v449
    %v451 = vpop.f32.mrb[0].mxu0
    %v452 = vpop.f32.mrb[0].mxu0
    %v453 = vadd.f32 0.0, %v452
    %v454 = vpop.f32.mrb[0].mxu0
    %455 = vmatprep.mubr.bf16.mxu0 0
    %456 = vmatmul.mubr.bf16.gmra.mrb[0].mxu0 %v319
    %v457 = vpop.f32.mrb[0].mxu0
    %v458 = vadd.f32 0.0, %v457
    %v459 = vpop.f32.mrb[0].mxu0
    %v460 = vpop.f32.mrb[0].mxu0
    %v461 = vadd.f32 0.0, %v460
    %v462 = vpop.f32.mrb[0].mxu0
    %463 = vmatprep.mubr.bf16.mxu0 0
    %464 = vmatmul.mubr.bf16.gmra.mrb[0].mxu0 %v322
    %v465 = vpop.f32.mrb[0].mxu0
    %v466 = vadd.f32 0.0, %v465
    %v467 = vpop.f32.mrb[0].mxu0
    %v468 = vpop.f32.mrb[0].mxu0
    %v469 = vadd.f32 0.0, %v468
    %v470 = vpop.f32.mrb[0].mxu0
    %471 = vmatprep.mubr.bf16.mxu0 0
    %472 = vmatmul.mubr.bf16.gmra.mrb[0].mxu0 %v325
    %v473 = vpop.f32.mrb[0].mxu0
    %v474 = vadd.f32 0.0, %v473
    %v475 = vpop.f32.mrb[0].mxu0
    %v476 = vpop.f32.mrb[0].mxu0
    %v477 = vadd.f32 0.0, %v476
    %v478 = vpop.f32.mrb[0].mxu0
    %479 = vmatprep.mubr.bf16.mxu0 0
    %480 = vmatmul.mubr.bf16.gmra.mrb[0].mxu0 %v328
    %v481 = vpop.f32.mrb[0].mxu0
    %v482 = vadd.f32 0.0, %v481
    %v483 = vpop.f32.mrb[0].mxu0
    %v484 = vpop.f32.mrb[0].mxu0
    %v485 = vadd.f32 0.0, %v484
    %v486 = vpop.f32.mrb[0].mxu0
    %487 = vmatprep.mubr.bf16.mxu0 0
    %488 = vmatmul.mubr.bf16.gmra.mrb[0].mxu0 %v331
    %v489 = vpop.f32.mrb[0].mxu0
    %v490 = vadd.f32 0.0, %v489
    %v491 = vpop.f32.mrb[0].mxu0
    %v492 = vpop.f32.mrb[0].mxu0
    %v493 = vadd.f32 0.0, %v492
    %v494 = vpop.f32.mrb[0].mxu0
    %495 = vmatprep.mubr.bf16.mxu0 0
    %496 = vmatmul.mubr.bf16.gmra.mrb[0].mxu0 %v334
    %v497 = vpop.f32.mrb[0].mxu0
    %v498 = vadd.f32 0.0, %v497
    %v499 = vpop.f32.mrb[0].mxu0
    %v500 = vpop.f32.mrb[0].mxu0
    %v501 = vadd.f32 0.0, %v500
    %v502 = vpop.f32.mrb[0].mxu0
    %503 = vmatprep.mubr.bf16.mxu0 0
    %504 = vmatmul.mubr.bf16.gmra.mrb[0].mxu0 %v337
    %v505 = vpop.f32.mrb[0].mxu0
    %v506 = vadd.f32 0.0, %v505
    %v507 = vpop.f32.mrb[0].mxu0
    %v508 = vpop.f32.mrb[0].mxu0
    %v509 = vadd.f32 0.0, %v508
    %v510 = vpop.f32.mrb[0].mxu0
    %511 = vmatprep.mubr.bf16.mxu0 0
    %512 = vmatmul.mubr.bf16.gmra.mrb[0].mxu0 %v340
    %v513 = vpop.f32.mrb[0].mxu0
    %v514 = vadd.f32 0.0, %v513
    %v515 = vpop.f32.mrb[0].mxu0
    %v516 = vpop.f32.mrb[0].mxu0
    %v517 = vadd.f32 0.0, %v516
    %v518 = vpop.f32.mrb[0].mxu0
    %519 = vmatprep.mubr.bf16.mxu0 0
    %520 = vmatmul.mubr.bf16.gmra.mrb[0].mxu0 %v343
    %v521 = vpop.f32.mrb[0].mxu0
    %v522 = vadd.f32 0.0, %v521
    %v523 = vpop.f32.mrb[0].mxu0
    %v524 = vpop.f32.mrb[0].mxu0
    %v525 = vadd.f32 0.0, %v524
    %v526 = vpop.f32.mrb[0].mxu0
    %527 = vmatprep.mubr.bf16.mxu0 0
    %528 = vmatmul.mubr.bf16.gmra.mrb[0].mxu0 %v346
    %v529 = vpop.f32.mrb[0].mxu0
    %v530 = vadd.f32 0.0, %v529
    %v531 = vpop.f32.mrb[0].mxu0
    %v532 = vpop.f32.mrb[0].mxu0
    %v533 = vadd.f32 0.0, %v532
    %v534 = vpop.f32.mrb[0].mxu0
    %535 = vmatprep.mubr.bf16.mxu0 0
    %536 = vmatmul.mubr.bf16.gmra.mrb[0].mxu0 %v349
    %v537 = vpop.f32.mrb[0].mxu0
    %v538 = vadd.f32 0.0, %v537
    %v539 = vpop.f32.mrb[0].mxu0
    %v540 = vpop.f32.mrb[0].mxu0
    %v541 = vadd.f32 0.0, %v540
    %v542 = vpop.f32.mrb[0].mxu0
    %543 = vmatprep.mubr.bf16.mxu0 0
    %544 = vmatmul.mubr.bf16.gmra.mrb[0].mxu0 %v352
    %v545 = vpop.f32.mrb[0].mxu0
    %v546 = vadd.f32 0.0, %v545
    %v547 = vpop.f32.mrb[0].mxu0
    %v548 = vpop.f32.mrb[0].mxu0
    %v549 = vadd.f32 0.0, %v548
    %v550 = vpop.f32.mrb[0].mxu0
    %551 = vmatprep.mubr.bf16.mxu0 0
    %552 = vmatmul.mubr.bf16.gmra.mrb[0].mxu0 %v355
    %v553 = vpop.f32.mrb[0].mxu0
    %v554 = vadd.f32 0.0, %v553
    %v555 = vpop.f32.mrb[0].mxu0
    %v556 = vpop.f32.mrb[0].mxu0
    %v557 = vadd.f32 0.0, %v556
    %v558 = vpop.f32.mrb[0].mxu0
    %559 = vmatprep.mubr.bf16.mxu0 0
    %560 = vmatmul.mubr.bf16.gmra.mrb[0].mxu0 %v358
    %v561 = vpop.f32.mrb[0].mxu0
    %v562 = vadd.f32 0.0, %v561
    %v563 = vpop.f32.mrb[0].mxu0
    %v564 = vpop.f32.mrb[0].mxu0
    %v565 = vadd.f32 0.0, %v564
    %v566 = vpop.f32.mrb[0].mxu0
    %567 = vmatprep.mubr.bf16.mxu0 0
    %568 = vmatmul.mubr.bf16.gmra.mrb[0].mxu0 %v361
    %v569 = vpop.f32.mrb[0].mxu0
    %v570 = vadd.f32 0.0, %v569
    %v571 = vpop.f32.mrb[0].mxu0
    %v572 = vpop.f32.mrb[0].mxu0
    %v573 = vadd.f32 0.0, %v572
    %v574 = vpop.f32.mrb[0].mxu0
    %575 = vmatprep.mubr.bf16.mxu0 0
    %576 = vmatmul.mubr.bf16.gmra.mrb[0].mxu0 %v364
    %v577 = vpop.f32.mrb[0].mxu0
    %v578 = vadd.f32 0.0, %v577
    %v579 = vpop.f32.mrb[0].mxu0
    %v580 = vpop.f32.mrb[0].mxu0
    %v581 = vadd.f32 0.0, %v580
    %v582 = vpop.f32.mrb[0].mxu0
    %583 = vmatprep.mubr.bf16.mxu0 0
    %584 = vmatmul.mubr.bf16.gmra.mrb[0].mxu0 %v367
    %v585 = vpop.f32.mrb[0].mxu0
    %v586 = vadd.f32 0.0, %v585
    %v587 = vpop.f32.mrb[0].mxu0
    %v588 = vpop.f32.mrb[0].mxu0
    %v589 = vadd.f32 0.0, %v588
    %v590 = vpop.f32.mrb[0].mxu0
    %591 = vmatprep.mubr.bf16.mxu0 0
    %592 = vmatmul.mubr.bf16.gmra.mrb[0].mxu0 %v370
    %v593 = vpop.f32.mrb[0].mxu0
    %v594 = vadd.f32 0.0, %v593
    %v595 = vpop.f32.mrb[0].mxu0
    %v596 = vpop.f32.mrb[0].mxu0
    %v597 = vadd.f32 0.0, %v596
    %v598 = vpop.f32.mrb[0].mxu0
    %599 = vmatprep.mubr.bf16.mxu0 0
    %600 = vmatmul.mubr.bf16.gmra.mrb[0].mxu0 %v373
    %v601 = vpop.f32.mrb[0].mxu0
    %v602 = vadd.f32 0.0, %v601
    %v603 = vpop.f32.mrb[0].mxu0
    %v604 = vpop.f32.mrb[0].mxu0
    %v605 = vadd.f32 0.0, %v604
    %v606 = vpop.f32.mrb[0].mxu0
    %607 = vmatprep.mubr.bf16.mxu0 0
    %608 = vmatmul.mubr.bf16.gmra.mrb[0].mxu0 %v376
    %v609 = vpop.f32.mrb[0].mxu0
    %v610 = vadd.f32 0.0, %v609
    %v611 = vpop.f32.mrb[0].mxu0
    %v612 = vpop.f32.mrb[0].mxu0
    %v613 = vadd.f32 0.0, %v612
    %v614 = vpop.f32.mrb[0].mxu0
    %615 = vmatprep.mubr.bf16.mxu0 0
    %616 = vmatmul.mubr.bf16.gmra.mrb[0].mxu0 %v379
    %v617 = vpop.f32.mrb[0].mxu0
    %v618 = vadd.f32 0.0, %v617
    %v619 = vpop.f32.mrb[0].mxu0
    %v620 = vpop.f32.mrb[0].mxu0
    %v621 = vadd.f32 0.0, %v620
    %v622 = vpop.f32.mrb[0].mxu0
    %623 = vmatprep.mubr.bf16.mxu0 0
    %624 = vmatmul.mubr.bf16.gmra.mrb[0].mxu0 %v382
    %v625 = vpop.f32.mrb[0].mxu0
    %v626 = vadd.f32 0.0, %v625
    %v627 = vpop.f32.mrb[0].mxu0
    %v628 = vpop.f32.mrb[0].mxu0
    %v629 = vadd.f32 0.0, %v628
    %v630 = vpop.f32.mrb[0].mxu0
    %631 = vmatprep.mubr.bf16.mxu0 0
    %632 = vmatmul.mubr.bf16.gmra.mrb[0].mxu0 %v385
    %v633 = vpop.f32.mrb[0].mxu0
    %v634 = vadd.f32 0.0, %v633
    %v635 = vpop.f32.mrb[0].mxu0
    %v636 = vpop.f32.mrb[0].mxu0
    %v637 = vadd.f32 0.0, %v636
    %v638 = vpop.f32.mrb[0].mxu0
    %639 = vmatprep.mubr.bf16.mxu0 0
    %640 = vmatmul.mubr.bf16.gmra.mrb[0].mxu0 %v388
    %v641 = vpop.f32.mrb[0].mxu0
    %v642 = vadd.f32 0.0, %v641
    %v643 = vpop.f32.mrb[0].mxu0
    %v644 = vpop.f32.mrb[0].mxu0
    %v645 = vadd.f32 0.0, %v644
    %v646 = vpop.f32.mrb[0].mxu0
    %647 = vmatprep.mubr.bf16.mxu0 0
    %648 = vmatmul.mubr.bf16.gmra.mrb[0].mxu0 %v391
    %v649 = vpop.f32.mrb[0].mxu0
    %v650 = vadd.f32 0.0, %v649
    %v651 = vpop.f32.mrb[0].mxu0
    %v652 = vpop.f32.mrb[0].mxu0
    %v653 = vadd.f32 0.0, %v652
    %v654 = vpop.f32.mrb[0].mxu0
    %655 = vmatprep.mubr.bf16.mxu0 0
    %656 = vmatmul.mubr.bf16.gmra.mrb[0].mxu0 %v394
    %v657 = vpop.f32.mrb[0].mxu0
    %v658 = vadd.f32 0.0, %v657
    %v659 = vpop.f32.mrb[0].mxu0
    %v660 = vpop.f32.mrb[0].mxu0
    %v661 = vadd.f32 0.0, %v660
    %v662 = vpop.f32.mrb[0].mxu0
    %663 = vmatprep.mubr.bf16.mxu0 0
    %664 = vmatmul.mubr.bf16.gmra.mrb[0].mxu0 %v397
    %v665 = vpop.f32.mrb[0].mxu0
    %v666 = vadd.f32 0.0, %v665
    %v667 = vpop.f32.mrb[0].mxu0
    %v668 = vpop.f32.mrb[0].mxu0
    %v669 = vadd.f32 0.0, %v668
    %v670 = vpop.f32.mrb[0].mxu0
    %671 = vmatprep.mubr.bf16.mxu0 0
    %672 = vmatmul.mubr.bf16.gmra.mrb[0].mxu0 %v400
    %v673 = vpop.f32.mrb[0].mxu0
    %v674 = vadd.f32 0.0, %v673
    %v675 = vpop.f32.mrb[0].mxu0
    %v676 = vpop.f32.mrb[0].mxu0
    %v677 = vadd.f32 0.0, %v676
    %v678 = vpop.f32.mrb[0].mxu0
    %679 = vmatprep.mubr.bf16.mxu0 0
    %680 = vmatmul.mubr.bf16.gmra.mrb[0].mxu0 %v403
    %v681 = vpop.f32.mrb[0].mxu0
    %v682 = vadd.f32 0.0, %v681
    %v683 = vpop.f32.mrb[0].mxu0
    %v684 = vpop.f32.mrb[0].mxu0
    %v685 = vadd.f32 0.0, %v684
    %v686 = vpop.f32.mrb[0].mxu0
    %687 = vmatprep.mubr.bf16.mxu0 0
    %688 = vmatmul.mubr.bf16.gmra.mrb[0].mxu0 %v406
    %v689 = vpop.f32.mrb[0].mxu0
    %v690 = vadd.f32 0.0, %v689
    %v691 = vpop.f32.mrb[0].mxu0
    %v692 = vpop.f32.mrb[0].mxu0
    %v693 = vadd.f32 0.0, %v692
    %v694 = vpop.f32.mrb[0].mxu0
    %695 = vmatprep.mubr.bf16.mxu0 0
    %696 = vmatmul.mubr.bf16.gmra.mrb[0].mxu0 %v409
    %v697 = vpop.f32.mrb[0].mxu0
    %v698 = vadd.f32 0.0, %v697
    %v699 = vpop.f32.mrb[0].mxu0
    %v700 = vpop.f32.mrb[0].mxu0
    %v701 = vadd.f32 0.0, %v700
    %v702 = vpop.f32.mrb[0].mxu0
    %703 = vdwg.mxu0
    %v704 = vld [vmem:[#allocation7] sm:$0x1]
    %v706 = vlaneseq
    %v707 = vshrl.u32 %v706, 7
    %v708 = vsub.s32 0, %v707
    %v709 = vrot.slane %v704, %v708
    %v711 = vmul.f32 %v450, %v709
    %v712 = vmul.f32 %v453, %v709
    %v713 = vmul.f32 %v458, %v709
    %v714 = vmul.f32 %v461, %v709
    %v715 = vmul.f32 %v466, %v709
    %v716 = vmul.f32 %v469, %v709
    %v717 = vmul.f32 %v474, %v709
    %v718 = vmul.f32 %v477, %v709
    %v719 = vmul.f32 %v482, %v709
    %v720 = vmul.f32 %v485, %v709
    %v721 = vmul.f32 %v490, %v709
    %v722 = vmul.f32 %v493, %v709
    %v723 = vmul.f32 %v498, %v709
    %v724 = vmul.f32 %v501, %v709
    %v725 = vmul.f32 %v506, %v709
    %v726 = vmul.f32 %v509, %v709
    %v727 = vmul.f32 %v514, %v709
    %v728 = vmul.f32 %v517, %v709
    %v729 = vmul.f32 %v522, %v709
    %v730 = vmul.f32 %v525, %v709
    %v731 = vmul.f32 %v530, %v709
    %v732 = vmul.f32 %v533, %v709
    %v733 = vmul.f32 %v538, %v709
    %v734 = vmul.f32 %v541, %v709
    %v735 = vmul.f32 %v546, %v709
    %v736 = vmul.f32 %v549, %v709
    %v737 = vmul.f32 %v554, %v709
    %v738 = vmul.f32 %v557, %v709
    %v739 = vmul.f32 %v562, %v709
    %v740 = vmul.f32 %v565, %v709
    %v741 = vmul.f32 %v570, %v709
    %v742 = vmul.f32 %v573, %v709
    %v743 = vmul.f32 %v578, %v709
    %v744 = vmul.f32 %v581, %v709
    %v745 = vmul.f32 %v586, %v709
    %v746 = vmul.f32 %v589, %v709
    %v747 = vmul.f32 %v594, %v709
    %v748 = vmul.f32 %v597, %v709
    %v749 = vmul.f32 %v602, %v709
    %v750 = vmul.f32 %v605, %v709
    %v751 = vmul.f32 %v610, %v709
    %v752 = vmul.f32 %v613, %v709
    %v753 = vmul.f32 %v618, %v709
    %v754 = vmul.f32 %v621, %v709
    %v755 = vmul.f32 %v626, %v709
    %v756 = vmul.f32 %v629, %v709
    %v757 = vmul.f32 %v634, %v709
    %v758 = vmul.f32 %v637, %v709
    %v759 = vmul.f32 %v642, %v709
    %v760 = vmul.f32 %v645, %v709
    %v761 = vmul.f32 %v650, %v709
    %v762 = vmul.f32 %v653, %v709
    %v763 = vmul.f32 %v658, %v709
    %v764 = vmul.f32 %v661, %v709
    %v765 = vmul.f32 %v666, %v709
    %v766 = vmul.f32 %v669, %v709
    %v767 = vmul.f32 %v674, %v709
    %v768 = vmul.f32 %v677, %v709
    %v769 = vmul.f32 %v682, %v709
    %v770 = vmul.f32 %v685, %v709
    %v771 = vmul.f32 %v690, %v709
    %v772 = vmul.f32 %v693, %v709
    %v773 = vmul.f32 %v698, %v709
    %v774 = vmul.f32 %v701, %v709
    %v775 = vld [vmem:[#allocation8] sm:$0x1]
    %v777 = vlaneseq
    %v778 = vshrl.u32 %v777, 7
    %v779 = vsub.s32 0, %v778
    %v780 = vrot.slane %v775, %v779
    %v782 = vadd.f32 %v711, %v780
    %v783 = vadd.f32 %v712, %v780
    %v784 = vadd.f32 %v713, %v780
    %v785 = vadd.f32 %v714, %v780
    %v786 = vadd.f32 %v715, %v780
    %v787 = vadd.f32 %v716, %v780
    %v788 = vadd.f32 %v717, %v780
    %v789 = vadd.f32 %v718, %v780
    %v790 = vadd.f32 %v719, %v780
    %v791 = vadd.f32 %v720, %v780
    %v792 = vadd.f32 %v721, %v780
    %v793 = vadd.f32 %v722, %v780
    %v794 = vadd.f32 %v723, %v780
    %v795 = vadd.f32 %v724, %v780
    %v796 = vadd.f32 %v725, %v780
    %v797 = vadd.f32 %v726, %v780
    %v798 = vadd.f32 %v727, %v780
    %v799 = vadd.f32 %v728, %v780
    %v800 = vadd.f32 %v729, %v780
    %v801 = vadd.f32 %v730, %v780
    %v802 = vadd.f32 %v731, %v780
    %v803 = vadd.f32 %v732, %v780
    %v804 = vadd.f32 %v733, %v780
    %v805 = vadd.f32 %v734, %v780
    %v806 = vadd.f32 %v735, %v780
    %v807 = vadd.f32 %v736, %v780
    %v808 = vadd.f32 %v737, %v780
    %v809 = vadd.f32 %v738, %v780
    %v810 = vadd.f32 %v739, %v780
    %v811 = vadd.f32 %v740, %v780
    %v812 = vadd.f32 %v741, %v780
    %v813 = vadd.f32 %v742, %v780
    %v814 = vadd.f32 %v743, %v780
    %v815 = vadd.f32 %v744, %v780
    %v816 = vadd.f32 %v745, %v780
    %v817 = vadd.f32 %v746, %v780
    %v818 = vadd.f32 %v747, %v780
    %v819 = vadd.f32 %v748, %v780
    %v820 = vadd.f32 %v749, %v780
    %v821 = vadd.f32 %v750, %v780
    %v822 = vadd.f32 %v751, %v780
    %v823 = vadd.f32 %v752, %v780
    %v824 = vadd.f32 %v753, %v780
    %v825 = vadd.f32 %v754, %v780
    %v826 = vadd.f32 %v755, %v780
    %v827 = vadd.f32 %v756, %v780
    %v828 = vadd.f32 %v757, %v780
    %v829 = vadd.f32 %v758, %v780
    %v830 = vadd.f32 %v759, %v780
    %v831 = vadd.f32 %v760, %v780
    %v832 = vadd.f32 %v761, %v780
    %v833 = vadd.f32 %v762, %v780
    %v834 = vadd.f32 %v763, %v780
    %v835 = vadd.f32 %v764, %v780
    %v836 = vadd.f32 %v765, %v780
    %v837 = vadd.f32 %v766, %v780
    %v838 = vadd.f32 %v767, %v780
    %v839 = vadd.f32 %v768, %v780
    %v840 = vadd.f32 %v769, %v780
    %v841 = vadd.f32 %v770, %v780
    %v842 = vadd.f32 %v771, %v780
    %v843 = vadd.f32 %v772, %v780
    %v844 = vadd.f32 %v773, %v780
    %v845 = vadd.f32 %v774, %v780
    %v846 = vmax.f32 %v782, 0.0
    %v847 = vmax.f32 %v783, 0.0
    %v848 = vmax.f32 %v784, 0.0
    %v849 = vmax.f32 %v785, 0.0
    %v850 = vmax.f32 %v786, 0.0
    %v851 = vmax.f32 %v787, 0.0
    %v852 = vmax.f32 %v788, 0.0
    %v853 = vmax.f32 %v789, 0.0
    %v854 = vmax.f32 %v790, 0.0
    %v855 = vmax.f32 %v791, 0.0
    %v856 = vmax.f32 %v792, 0.0
    %v857 = vmax.f32 %v793, 0.0
    %v858 = vmax.f32 %v794, 0.0
    %v859 = vmax.f32 %v795, 0.0
    %v860 = vmax.f32 %v796, 0.0
    %v861 = vmax.f32 %v797, 0.0
    %v862 = vmax.f32 %v798, 0.0
    %v863 = vmax.f32 %v799, 0.0
    %v864 = vmax.f32 %v800, 0.0
    %v865 = vmax.f32 %v801, 0.0
    %v866 = vmax.f32 %v802, 0.0
    %v867 = vmax.f32 %v803, 0.0
    %v868 = vmax.f32 %v804, 0.0
    %v869 = vmax.f32 %v805, 0.0
    %v870 = vmax.f32 %v806, 0.0
    %v871 = vmax.f32 %v807, 0.0
    %v872 = vmax.f32 %v808, 0.0
    %v873 = vmax.f32 %v809, 0.0
    %v874 = vmax.f32 %v810, 0.0
    %v875 = vmax.f32 %v811, 0.0
    %v876 = vmax.f32 %v812, 0.0
    %v877 = vmax.f32 %v813, 0.0
    %v878 = vmax.f32 %v814, 0.0
    %v879 = vmax.f32 %v815, 0.0
    %v880 = vmax.f32 %v816, 0.0
    %v881 = vmax.f32 %v817, 0.0
    %v882 = vmax.f32 %v818, 0.0
    %v883 = vmax.f32 %v819, 0.0
    %v884 = vmax.f32 %v820, 0.0
    %v885 = vmax.f32 %v821, 0.0
    %v886 = vmax.f32 %v822, 0.0
    %v887 = vmax.f32 %v823, 0.0
    %v888 = vmax.f32 %v824, 0.0
    %v889 = vmax.f32 %v825, 0.0
    %v890 = vmax.f32 %v826, 0.0
    %v891 = vmax.f32 %v827, 0.0
    %v892 = vmax.f32 %v828, 0.0
    %v893 = vmax.f32 %v829, 0.0
    %v894 = vmax.f32 %v830, 0.0
    %v895 = vmax.f32 %v831, 0.0
    %v896 = vmax.f32 %v832, 0.0
    %v897 = vmax.f32 %v833, 0.0
    %v898 = vmax.f32 %v834, 0.0
    %v899 = vmax.f32 %v835, 0.0
    %v900 = vmax.f32 %v836, 0.0
    %v901 = vmax.f32 %v837, 0.0
    %v902 = vmax.f32 %v838, 0.0
    %v903 = vmax.f32 %v839, 0.0
    %v904 = vmax.f32 %v840, 0.0
    %v905 = vmax.f32 %v841, 0.0
    %v906 = vmax.f32 %v842, 0.0
    %v907 = vmax.f32 %v843, 0.0
    %v908 = vmax.f32 %v844, 0.0
    %v909 = vmax.f32 %v845, 0.0
    %v910 = vpack.c.bf16 %v847, %v846
    %v911 = vpack.c.bf16 %v849, %v848
    %v912 = vpack.c.bf16 %v851, %v850
    %v913 = vpack.c.bf16 %v853, %v852
    %v914 = vpack.c.bf16 %v855, %v854
    %v915 = vpack.c.bf16 %v857, %v856
    %v916 = vpack.c.bf16 %v859, %v858
    %v917 = vpack.c.bf16 %v861, %v860
    %v918 = vpack.c.bf16 %v863, %v862
    %v919 = vpack.c.bf16 %v865, %v864
    %v920 = vpack.c.bf16 %v867, %v866
    %v921 = vpack.c.bf16 %v869, %v868
    %v922 = vpack.c.bf16 %v871, %v870
    %v923 = vpack.c.bf16 %v873, %v872
    %v924 = vpack.c.bf16 %v875, %v874
    %v925 = vpack.c.bf16 %v877, %v876
    %v926 = vpack.c.bf16 %v879, %v878
    %v927 = vpack.c.bf16 %v881, %v880
    %v928 = vpack.c.bf16 %v883, %v882
    %v929 = vpack.c.bf16 %v885, %v884
    %v930 = vpack.c.bf16 %v887, %v886
    %v931 = vpack.c.bf16 %v889, %v888
    %v932 = vpack.c.bf16 %v891, %v890
    %v933 = vpack.c.bf16 %v893, %v892
    %v934 = vpack.c.bf16 %v895, %v894
    %v935 = vpack.c.bf16 %v897, %v896
    %v936 = vpack.c.bf16 %v899, %v898
    %v937 = vpack.c.bf16 %v901, %v900
    %v938 = vpack.c.bf16 %v903, %v902
    %v939 = vpack.c.bf16 %v905, %v904
    %v940 = vpack.c.bf16 %v907, %v906
    %v941 = vpack.c.bf16 %v909, %v908
    %v974 = vunpack.c.l.b16 %v910
    %v975 = vunpack.c.h.b16 %v910
    %v976 = vunpack.c.l.b16 %v911
    %v977 = vunpack.c.h.b16 %v911
    %v978 = vunpack.c.l.b16 %v912
    %v979 = vunpack.c.h.b16 %v912
    %v980 = vunpack.c.l.b16 %v913
    %v981 = vunpack.c.h.b16 %v913
    %v982 = vunpack.c.l.b16 %v914
    %v983 = vunpack.c.h.b16 %v914
    %v984 = vunpack.c.l.b16 %v915
    %v985 = vunpack.c.h.b16 %v915
    %v986 = vunpack.c.l.b16 %v916
    %v987 = vunpack.c.h.b16 %v916
    %v988 = vunpack.c.l.b16 %v917
    %v989 = vunpack.c.h.b16 %v917
    %v990 = vunpack.c.l.b16 %v918
    %v991 = vunpack.c.h.b16 %v918
    %v992 = vunpack.c.l.b16 %v919
    %v993 = vunpack.c.h.b16 %v919
    %v994 = vunpack.c.l.b16 %v920
    %v995 = vunpack.c.h.b16 %v920
    %v996 = vunpack.c.l.b16 %v921
    %v997 = vunpack.c.h.b16 %v921
    %v998 = vunpack.c.l.b16 %v922
    %v999 = vunpack.c.h.b16 %v922
    %v1000 = vunpack.c.l.b16 %v923
    %v1001 = vunpack.c.h.b16 %v923
    %v1002 = vunpack.c.l.b16 %v924
    %v1003 = vunpack.c.h.b16 %v924
    %v1004 = vunpack.c.l.b16 %v925
    %v1005 = vunpack.c.h.b16 %v925
    %v1006 = vunpack.c.l.b16 %v926
    %v1007 = vunpack.c.h.b16 %v926
    %v1008 = vunpack.c.l.b16 %v927
    %v1009 = vunpack.c.h.b16 %v927
    %v1010 = vunpack.c.l.b16 %v928
    %v1011 = vunpack.c.h.b16 %v928
    %v1012 = vunpack.c.l.b16 %v929
    %v1013 = vunpack.c.h.b16 %v929
    %v1014 = vunpack.c.l.b16 %v930
    %v1015 = vunpack.c.h.b16 %v930
    %v1016 = vunpack.c.l.b16 %v931
    %v1017 = vunpack.c.h.b16 %v931
    %v1018 = vunpack.c.l.b16 %v932
    %v1019 = vunpack.c.h.b16 %v932
    %v1020 = vunpack.c.l.b16 %v933
    %v1021 = vunpack.c.h.b16 %v933
    %v1022 = vunpack.c.l.b16 %v934
    %v1023 = vunpack.c.h.b16 %v934
    %v1024 = vunpack.c.l.b16 %v935
    %v1025 = vunpack.c.h.b16 %v935
    %v1026 = vunpack.c.l.b16 %v936
    %v1027 = vunpack.c.h.b16 %v936
    %v1028 = vunpack.c.l.b16 %v937
    %v1029 = vunpack.c.h.b16 %v937
    %v1030 = vunpack.c.l.b16 %v938
    %v1031 = vunpack.c.h.b16 %v938
    %v1032 = vunpack.c.l.b16 %v939
    %v1033 = vunpack.c.h.b16 %v939
    %v1034 = vunpack.c.l.b16 %v940
    %v1035 = vunpack.c.h.b16 %v940
    %v1036 = vunpack.c.l.b16 %v941
    %v1037 = vunpack.c.h.b16 %v941
    %v1038 = vpack.c.b16 %v974, %v974
    %v1039 = vpack.c.b16 %v975, %v975
    %v1040 = vpack.c.b16 %v976, %v976
    %v1041 = vpack.c.b16 %v977, %v977
    %v1042 = vpack.c.b16 %v978, %v978
    %v1043 = vpack.c.b16 %v979, %v979
    %v1044 = vpack.c.b16 %v980, %v980
    %v1045 = vpack.c.b16 %v981, %v981
    %v1046 = vpack.c.b16 %v982, %v982
    %v1047 = vpack.c.b16 %v983, %v983
    %v1048 = vpack.c.b16 %v984, %v984
    %v1049 = vpack.c.b16 %v985, %v985
    %v1050 = vpack.c.b16 %v986, %v986
    %v1051 = vpack.c.b16 %v987, %v987
    %v1052 = vpack.c.b16 %v988, %v988
    %v1053 = vpack.c.b16 %v989, %v989
    %v1054 = vpack.c.b16 %v990, %v990
    %v1055 = vpack.c.b16 %v991, %v991
    %v1056 = vpack.c.b16 %v992, %v992
    %v1057 = vpack.c.b16 %v993, %v993
    %v1058 = vpack.c.b16 %v994, %v994
    %v1059 = vpack.c.b16 %v995, %v995
    %v1060 = vpack.c.b16 %v996, %v996
    %v1061 = vpack.c.b16 %v997, %v997
    %v1062 = vpack.c.b16 %v998, %v998
    %v1063 = vpack.c.b16 %v999, %v999
    %v1064 = vpack.c.b16 %v1000, %v1000
    %v1065 = vpack.c.b16 %v1001, %v1001
    %v1066 = vpack.c.b16 %v1002, %v1002
    %v1067 = vpack.c.b16 %v1003, %v1003
    %v1068 = vpack.c.b16 %v1004, %v1004
    %v1069 = vpack.c.b16 %v1005, %v1005
    %v1070 = vpack.c.b16 %v1006, %v1006
    %v1071 = vpack.c.b16 %v1007, %v1007
    %v1072 = vpack.c.b16 %v1008, %v1008
    %v1073 = vpack.c.b16 %v1009, %v1009
    %v1074 = vpack.c.b16 %v1010, %v1010
    %v1075 = vpack.c.b16 %v1011, %v1011
    %v1076 = vpack.c.b16 %v1012, %v1012
    %v1077 = vpack.c.b16 %v1013, %v1013
    %v1078 = vpack.c.b16 %v1014, %v1014
    %v1079 = vpack.c.b16 %v1015, %v1015
    %v1080 = vpack.c.b16 %v1016, %v1016
    %v1081 = vpack.c.b16 %v1017, %v1017
    %v1082 = vpack.c.b16 %v1018, %v1018
    %v1083 = vpack.c.b16 %v1019, %v1019
    %v1084 = vpack.c.b16 %v1020, %v1020
    %v1085 = vpack.c.b16 %v1021, %v1021
    %v1086 = vpack.c.b16 %v1022, %v1022
    %v1087 = vpack.c.b16 %v1023, %v1023
    %v1088 = vpack.c.b16 %v1024, %v1024
    %v1089 = vpack.c.b16 %v1025, %v1025
    %v1090 = vpack.c.b16 %v1026, %v1026
    %v1091 = vpack.c.b16 %v1027, %v1027
    %v1092 = vpack.c.b16 %v1028, %v1028
    %v1093 = vpack.c.b16 %v1029, %v1029
    %v1094 = vpack.c.b16 %v1030, %v1030
    %v1095 = vpack.c.b16 %v1031, %v1031
    %v1096 = vpack.c.b16 %v1032, %v1032
    %v1097 = vpack.c.b16 %v1033, %v1033
    %v1098 = vpack.c.b16 %v1034, %v1034
    %v1099 = vpack.c.b16 %v1035, %v1035
    %v1100 = vpack.c.b16 %v1036, %v1036
    %v1101 = vpack.c.b16 %v1037, %v1037
    %1166 = vst [vmem:[#allocation10] sm:$0xf] %v1038
    %1167 = vst [vmem:[#allocation10 + $0x4] sm:$0xf] %v1039
    %1168 = vst [vmem:[#allocation10 + $0x8] sm:$0xf] %v1040
    %1169 = vst [vmem:[#allocation10 + $0xc] sm:$0xf] %v1041
    %1170 = vst [vmem:[#allocation10 + $0x10] sm:$0xf] %v1042
    %1171 = vst [vmem:[#allocation10 + $0x14] sm:$0xf] %v1043
    %1172 = vst [vmem:[#allocation10 + $0x18] sm:$0xf] %v1044
    %1173 = vst [vmem:[#allocation10 + $0x1c] sm:$0xf] %v1045
    %1174 = vst [vmem:[#allocation10 + $0x20] sm:$0xf] %v1046
    %1175 = vst [vmem:[#allocation10 + $0x24] sm:$0xf] %v1047
    %1176 = vst [vmem:[#allocation10 + $0x28] sm:$0xf] %v1048
    %1177 = vst [vmem:[#allocation10 + $0x2c] sm:$0xf] %v1049
    %1178 = vst [vmem:[#allocation10 + $0x30] sm:$0xf] %v1050
    %1179 = vst [vmem:[#allocation10 + $0x34] sm:$0xf] %v1051
    %1180 = vst [vmem:[#allocation10 + $0x38] sm:$0xf] %v1052
    %1181 = vst [vmem:[#allocation10 + $0x3c] sm:$0xf] %v1053
    %1182 = vst [vmem:[#allocation10 + $0x40] sm:$0xf] %v1054
    %1183 = vst [vmem:[#allocation10 + $0x44] sm:$0xf] %v1055
    %1184 = vst [vmem:[#allocation10 + $0x48] sm:$0xf] %v1056
    %1185 = vst [vmem:[#allocation10 + $0x4c] sm:$0xf] %v1057
    %1186 = vst [vmem:[#allocation10 + $0x50] sm:$0xf] %v1058
    %1187 = vst [vmem:[#allocation10 + $0x54] sm:$0xf] %v1059
    %1188 = vst [vmem:[#allocation10 + $0x58] sm:$0xf] %v1060
    %1189 = vst [vmem:[#allocation10 + $0x5c] sm:$0xf] %v1061
    %1190 = vst [vmem:[#allocation10 + $0x60] sm:$0xf] %v1062
    %1191 = vst [vmem:[#allocation10 + $0x64] sm:$0xf] %v1063
    %1192 = vst [vmem:[#allocation10 + $0x68] sm:$0xf] %v1064
    %1193 = vst [vmem:[#allocation10 + $0x6c] sm:$0xf] %v1065
    %1194 = vst [vmem:[#allocation10 + $0x70] sm:$0xf] %v1066
    %1195 = vst [vmem:[#allocation10 + $0x74] sm:$0xf] %v1067
    %1196 = vst [vmem:[#allocation10 + $0x78] sm:$0xf] %v1068
    %1197 = vst [vmem:[#allocation10 + $0x7c] sm:$0xf] %v1069
    %1198 = vst [vmem:[#allocation10 + $0x80] sm:$0xf] %v1070
    %1199 = vst [vmem:[#allocation10 + $0x84] sm:$0xf] %v1071
    %1200 = vst [vmem:[#allocation10 + $0x88] sm:$0xf] %v1072
    %1201 = vst [vmem:[#allocation10 + $0x8c] sm:$0xf] %v1073
    %1202 = vst [vmem:[#allocation10 + $0x90] sm:$0xf] %v1074
    %1203 = vst [vmem:[#allocation10 + $0x94] sm:$0xf] %v1075
    %1204 = vst [vmem:[#allocation10 + $0x98] sm:$0xf] %v1076
    %1205 = vst [vmem:[#allocation10 + $0x9c] sm:$0xf] %v1077
    %1206 = vst [vmem:[#allocation10 + $0xa0] sm:$0xf] %v1078
    %1207 = vst [vmem:[#allocation10 + $0xa4] sm:$0xf] %v1079
    %1208 = vst [vmem:[#allocation10 + $0xa8] sm:$0xf] %v1080
    %1209 = vst [vmem:[#allocation10 + $0xac] sm:$0xf] %v1081
    %1210 = vst [vmem:[#allocation10 + $0xb0] sm:$0xf] %v1082
    %1211 = vst [vmem:[#allocation10 + $0xb4] sm:$0xf] %v1083
    %1212 = vst [vmem:[#allocation10 + $0xb8] sm:$0xf] %v1084
    %1213 = vst [vmem:[#allocation10 + $0xbc] sm:$0xf] %v1085
    %1214 = vst [vmem:[#allocation10 + $0xc0] sm:$0xf] %v1086
    %1215 = vst [vmem:[#allocation10 + $0xc4] sm:$0xf] %v1087
    %1216 = vst [vmem:[#allocation10 + $0xc8] sm:$0xf] %v1088
    %1217 = vst [vmem:[#allocation10 + $0xcc] sm:$0xf] %v1089
    %1218 = vst [vmem:[#allocation10 + $0xd0] sm:$0xf] %v1090
    %1219 = vst [vmem:[#allocation10 + $0xd4] sm:$0xf] %v1091
    %1220 = vst [vmem:[#allocation10 + $0xd8] sm:$0xf] %v1092
    %1221 = vst [vmem:[#allocation10 + $0xdc] sm:$0xf] %v1093
    %1222 = vst [vmem:[#allocation10 + $0xe0] sm:$0xf] %v1094
    %1223 = vst [vmem:[#allocation10 + $0xe4] sm:$0xf] %v1095
    %1224 = vst [vmem:[#allocation10 + $0xe8] sm:$0xf] %v1096
    %1225 = vst [vmem:[#allocation10 + $0xec] sm:$0xf] %v1097
    %1226 = vst [vmem:[#allocation10 + $0xf0] sm:$0xf] %v1098
    %1227 = vst [vmem:[#allocation10 + $0xf4] sm:$0xf] %v1099
    %1228 = vst [vmem:[#allocation10 + $0xf8] sm:$0xf] %v1100
    %1229 = vst [vmem:[#allocation10 + $0xfc] sm:$0xf] %v1101
    // Predicated region
    $region34: #{conv2d_block.3} parent=1 // pred_check
      _
    $region35: #{conv2d_block.3} parent=1 // pred_check_branch
      %1231 = sbr.rel (0) target = $region37
    $region36: #{conv2d_block.3} parent=1 // pred_region
      %s1233 = ssub.s32 4096, 4096
      %1234 = vsyncadd [#allocation4], %s1233
      %s1235 = sshll.u32 [#allocation10], 4
      %s1236 = int_to_ptr.vmem [resolvable:$true] %s1235
      %1241 = dma.vmem_to_hbm [thread:$0]  %s1236, 4096, %s4, [#allocation4], 64, 64, 4
    $region37: #{conv2d_block.3} parent=1 // pred_fallthru
      _
    // Predicated region
    $region38: #{conv2d_block.3} parent=1 // pred_check
      _
    $region39: #{conv2d_block.3} parent=1 // pred_check_branch
      %1243 = sbr.rel (0) target = $region41
    $region40: #{conv2d_block.3} parent=1 // pred_region
      %1244 = dma.done [#allocation4], 4096
    $region41: #{conv2d_block.3} parent=1 // pred_fallthru
      _
    %1245 = vsyncpa [#allocation3], 1
    %1246 = vsyncpa [#allocation6], 1
    %1247 = vsyncpa [#allocation9], 1
    %1248 = vsyncpa [#allocation4], 1

</llo_original>
